<compile_context>
chip_gen: v6e
topology: v6e:2x2x1
jax: 0.10.0
libtpu: 0.0.40
codegen_flags: <defaults>
</compile_context>

<pallas_src>
import jax
import jax.numpy as jnp
import numpy as np
from jax.experimental import pallas as pl
from jax.experimental.pallas import tpu as pltpu

K = 4          # ConvTranspose2d kernel_size
STRIDE = 2
PAD = 1
EPS = 1e-5     # BatchNorm2d default eps
NEG_SLOPE = 0.1


# ----------------------------- Pallas kernels ------------------------------

def convt_phase_kernel(xcol_ref, w_ref, y_ref, stat_ref):
    # xcol_ref: (1, 1, 4*C_in, TS)   bf16  folded taps x channels, spatial tile
    # w_ref   : (1, C_out, 4*C_in)   bf16  this output phase's folded weight
    # y_ref   : (1, 1, C_out, TS)    f32   phase output (spatial on lanes)
    # stat_ref: (1, 1, 1, C_out, 8)  f32   col 0: sum, col 1: sum of squares
    acc = jnp.dot(w_ref[0], xcol_ref[0, 0],
                  preferred_element_type=jnp.float32)          # (C_out, TS)
    y_ref[0, 0] = acc
    stat_ref[0, 0, 0, :, 0:1] = jnp.sum(acc, axis=1, keepdims=True)
    stat_ref[0, 0, 0, :, 1:2] = jnp.sum(acc * acc, axis=1, keepdims=True)


def bn_lrelu_concat_kernel(y_ref, skip_ref, scale_ref, shift_ref, o_ref):
    # y_ref    : (1, C_out, TH, OW)           f32  conv output rows (NCHW)
    # skip_ref : (1, C_skip, TH, OW)          f32
    # scale_ref: (C_out, 1, OW), shift_ref: (C_out, 1, OW)   f32 per-channel BN affine
    # o_ref    : (1, C_out + C_skip, TH, OW)  f32  final concat output
    c_out = y_ref.shape[1]
    z = y_ref[0] * scale_ref[...] + shift_ref[...]
    z = jnp.where(z >= 0, z, NEG_SLOPE * z)
    o_ref[0, :c_out] = z
    o_ref[0, c_out:] = skip_ref[0]


# ------------------------------- wrapper ------------------------------------

def _largest_tile(total, quantum, cap):
    """Largest multiple of `quantum` dividing `total` and <= cap, else `total`."""
    t = (min(cap, total) // quantum) * quantum
    while t >= quantum:
        if total % t == 0:
            return t
        t -= quantum
    return total   # block == full extent is always legal


def conv_transpose_block(x_nchw, w_t, gamma, beta, skip_nchw,
                         conv_spatial_cap=2048, out_row_cap=256):
    """Equivalent of faceshifter conv_transpose.forward(input, skip)."""
    N, C_in, H, W = x_nchw.shape
    C_out = w_t.shape[1]
    C_skip = skip_nchw.shape[1]
    OH, OW = STRIDE * H, STRIDE * W
    S = H * W
    TPD = K // STRIDE                 # 2 taps per output phase per spatial dim
    TAPS = TPD * TPD                  # 4 taps per phase
    NPH = STRIDE * STRIDE             # 4 output phases

    # ---- stride-phase im2col (original resolution, no dilation zeros) -------
    x_bf = x_nchw.astype(jnp.bfloat16)
    w_bf = w_t.astype(jnp.bfloat16)
    xp = jnp.pad(x_bf, ((0, 0), (0, 0), (1, 1), (1, 1)))       # (N, C_in, H+2, W+2)

    cols, wmats = [], []
    for ph in range(STRIDE):
        for pw in range(STRIDE):
            slabs, wtaps = [], []
            for dh in range(TPD):
                for dw in range(TPD):
                    slabs.append(
                        xp[:, :, ph + dh:ph + dh + H, pw + dw:pw + dw + W])
                    kh = (K - 1 - ph) - STRIDE * dh
                    kw = (K - 1 - pw) - STRIDE * dw
                    wtaps.append(w_bf[:, :, kh, kw])            # (C_in, C_out)
            # (N, TAPS, C_in, H, W) -> (N, TAPS*C_in, S)
            cols.append(jnp.stack(slabs, axis=1).reshape(N, TAPS * C_in, S))
            # (TAPS, C_in, C_out) -> (C_out, TAPS*C_in)
            wmats.append(jnp.stack(wtaps, axis=0).reshape(TAPS * C_in, C_out).T)
    xcol = jnp.stack(cols, axis=1)                              # (N, 4, TAPS*C_in, S)
    w_mm = jnp.stack(wmats, axis=0)                             # (4, C_out, TAPS*C_in)
    # TODO(synk): the 4 shifted slabs per phase could be sliced in-kernel from
    # the padded input (pl.ANY + static ref slices) to avoid materializing xcol.

    TS = _largest_tile(S, 128, conv_spatial_cap)
    n_s = S // TS

    y_phases, stats = pl.pallas_call(
        convt_phase_kernel,
        out_shape=(
            jax.ShapeDtypeStruct((N, NPH, C_out, S), jnp.float32),
            jax.ShapeDtypeStruct((N, NPH, n_s, C_out, 8), jnp.float32),
        ),
        grid=(N, NPH, n_s),
        in_specs=[
            pl.BlockSpec((1, 1, TAPS * C_in, TS), lambda n, p, s: (n, p, 0, s)),
            pl.BlockSpec((1, C_out, TAPS * C_in), lambda n, p, s: (p, 0, 0)),
        ],
        out_specs=[
            pl.BlockSpec((1, 1, C_out, TS), lambda n, p, s: (n, p, 0, s)),
            pl.BlockSpec((1, 1, 1, C_out, 8), lambda n, p, s: (n, p, s, 0, 0)),
        ],
        compiler_params=pltpu.CompilerParams(
            dimension_semantics=("parallel", "parallel", "parallel")),
    )(xcol, w_mm)

    # ---- BatchNorm batch statistics from the kernel's partial sums ----------
    count = N * NPH * S                                         # == N * OH * OW
    ssum = jnp.sum(stats[..., 0], axis=(0, 1, 2))               # (C_out,)
    ssq = jnp.sum(stats[..., 1], axis=(0, 1, 2))
    mean = ssum / count
    var = ssq / count - mean * mean                             # biased, like torch BN fwd
    scale = gamma.astype(jnp.float32) * jax.lax.rsqrt(var + EPS)
    shift = beta.astype(jnp.float32) - mean * scale
    scale_b = jnp.broadcast_to(scale[:, None, None], (C_out, 1, OW))
    shift_b = jnp.broadcast_to(shift[:, None, None], (C_out, 1, OW))

    # ---- reassemble output phases into NCHW: out[.,c,2i+ph,2j+pw] ----------
    # TODO(synk): this de-interleave is the one remaining XLA pass over y.
    y_nchw = y_phases.reshape(N, STRIDE, STRIDE, C_out, H, W)
    y_nchw = jnp.transpose(y_nchw, (0, 3, 4, 1, 5, 2)).reshape(N, C_out, OH, OW)

    # ---- fused normalize + affine + LeakyReLU + concat(skip) ---------------
    TH = _largest_tile(OH, 8, out_row_cap)
    out = pl.pallas_call(
        bn_lrelu_concat_kernel,
        out_shape=jax.ShapeDtypeStruct((N, C_out + C_skip, OH, OW), jnp.float32),
        grid=(N, OH // TH),
        in_specs=[
            pl.BlockSpec((1, C_out, TH, OW), lambda n, r: (n, 0, r, 0)),
            pl.BlockSpec((1, C_skip, TH, OW), lambda n, r: (n, 0, r, 0)),
            pl.BlockSpec((C_out, 1, OW), lambda n, r: (0, 0, 0)),
            pl.BlockSpec((C_out, 1, OW), lambda n, r: (0, 0, 0)),
        ],
        out_specs=pl.BlockSpec((1, C_out + C_skip, TH, OW),
                               lambda n, r: (n, 0, r, 0)),
        compiler_params=pltpu.CompilerParams(
            dimension_semantics=("parallel", "parallel")),
    )(y_nchw, skip_nchw.astype(jnp.float32), scale_b, shift_b)
    return out


# --------------------------- numpy reference ---------------------------------

def torch_reference(x, w_t, gamma, beta, skip):
    x = np.asarray(x, np.float64)
    w = np.asarray(w_t, np.float64)
    N, C_in, H, W = x.shape
    C_out = w.shape[1]
    out_full = np.zeros((N, C_out, STRIDE * H + K - STRIDE, STRIDE * W + K - STRIDE))
    for kh in range(K):
        for kw in range(K):
            contrib = np.einsum('ncij,co->noij', x, w[:, :, kh, kw])
            out_full[:, :, kh:kh + STRIDE * H:STRIDE,
                           kw:kw + STRIDE * W:STRIDE] += contrib
    y = out_full[:, :, PAD:PAD + STRIDE * H, PAD:PAD + STRIDE * W]
    mean = y.mean(axis=(0, 2, 3), keepdims=True)
    var = y.var(axis=(0, 2, 3), keepdims=True)          # biased, like torch BN fwd
    z = (y - mean) / np.sqrt(var + EPS)
    z = z * np.asarray(gamma, np.float64).reshape(1, -1, 1, 1) \
          + np.asarray(beta, np.float64).reshape(1, -1, 1, 1)
    z = np.where(z >= 0, z, NEG_SLOPE * z)
    return np.concatenate([z, np.asarray(skip, np.float64)], axis=1)


if __name__ == "__main__":
    key = jax.random.PRNGKey(0)
    kx, kw_, kg, kb, ks = jax.random.split(key, 5)

    N, C_in, C_out, H, W = 2, 4, 8, 16, 16      # output spatial = 32x32
    C_skip = 4

    x = jax.random.normal(kx, (N, C_in, H, W), jnp.float32)
    w_t = 0.1 * jax.random.normal(kw_, (C_in, C_out, K, K), jnp.float32)   # ConvTranspose2d weight
    gamma = 1.0 + 0.1 * jax.random.normal(kg, (C_out,), jnp.float32)       # BN weight
    beta = 0.1 * jax.random.normal(kb, (C_out,), jnp.float32)              # BN bias
    skip = jax.random.normal(ks, (N, C_skip, STRIDE * H, STRIDE * W), jnp.float32)

    # small tile caps so the spatial grid axes are actually exercised (2 conv
    # spatial tiles per phase, 2 output-row tiles per batch element).
    fn = jax.jit(lambda *a: conv_transpose_block(
        *a, conv_spatial_cap=128, out_row_cap=16))
    out = jax.block_until_ready(fn(x, w_t, gamma, beta, skip))

    # reference uses the same bf16-rounded operands (the kernel does the matmul
    # in bf16 with f32 accumulation), everything else in f64.
    x_r = np.asarray(x.astype(jnp.bfloat16).astype(jnp.float32))
    w_r = np.asarray(w_t.astype(jnp.bfloat16).astype(jnp.float32))
    ref = torch_reference(x_r, w_r, gamma, beta, skip)
    np.testing.assert_allclose(np.asarray(out), ref, rtol=5e-3, atol=5e-3)
    print("KERNEL_OK")
</pallas_src>

<mosaic_0001>
module attributes {stable_mosaic.version = 11 : i64} {
  func.func @convt_phase_kernel(%arg0: i32, %arg1: i32, %arg2: i32, %arg3: memref<1x1x16x128xbf16, #tpu.memory_space<vmem>>, %arg4: memref<1x8x16xbf16, #tpu.memory_space<vmem>>, %arg5: memref<1x1x8x128xf32, #tpu.memory_space<vmem>>, %arg6: memref<1x1x1x8x8xf32, #tpu.memory_space<vmem>>) attributes {dimension_semantics = [#tpu.dimension_semantics<parallel>, #tpu.dimension_semantics<parallel>, #tpu.dimension_semantics<parallel>], iteration_bounds = array<i64: 2, 4, 2>, scalar_prefetch = 0 : i64, scratch_operands = 0 : i64, tpu.core_type = #tpu.core_type<tc>, window_params = [{transform_indices = @transform_0, window_bounds = array<i64: 1, 1, 16, 128>}, {transform_indices = @transform_1, window_bounds = array<i64: 1, 8, 16>}, {transform_indices = @transform_2, window_bounds = array<i64: 1, 1, 8, 128>}, {transform_indices = @transform_3, window_bounds = array<i64: 1, 1, 1, 8, 8>}]} {
    %c0 = arith.constant 0 : index
    %c0_0 = arith.constant 0 : index
    %c0_1 = arith.constant 0 : index
    %0 = vector.load %arg4[%c0, %c0_0, %c0_1] : memref<1x8x16xbf16, #tpu.memory_space<vmem>>, vector<1x8x16xbf16>
    %1 = vector.shape_cast %0 : vector<1x8x16xbf16> to vector<8x16xbf16>
    %c0_2 = arith.constant 0 : index
    %c0_3 = arith.constant 0 : index
    %c0_4 = arith.constant 0 : index
    %c0_5 = arith.constant 0 : index
    %2 = vector.load %arg3[%c0_2, %c0_3, %c0_4, %c0_5] : memref<1x1x16x128xbf16, #tpu.memory_space<vmem>>, vector<1x1x16x128xbf16>
    %3 = vector.shape_cast %2 : vector<1x1x16x128xbf16> to vector<16x128xbf16>
    %cst = arith.constant dense<0.000000e+00> : vector<8x128xf32>
    %4 = tpu.matmul %1, %3, %cst {dimension_numbers = #tpu.dot_dimension_numbers<[1], [0], [0], [1], [0, 0, 1, 1], [], []>} : vector<8x16xbf16>, vector<16x128xbf16>, vector<8x128xf32> -> vector<8x128xf32>
    %c0_6 = arith.constant 0 : index
    %c0_7 = arith.constant 0 : index
    %c0_8 = arith.constant 0 : index
    %c0_9 = arith.constant 0 : index
    %5 = vector.load %arg5[%c0_6, %c0_7, %c0_8, %c0_9] : memref<1x1x8x128xf32, #tpu.memory_space<vmem>>, vector<1x1x8x128xf32>
    %6 = vector.shape_cast %5 : vector<1x1x8x128xf32> to vector<8x128xf32>
    %7 = vector.shape_cast %4 : vector<8x128xf32> to vector<1x1x8x128xf32>
    tpu.vector_store %arg5[%c0_6, %c0_7, %c0_8, %c0_9], %7 {strides = array<i32>} : memref<1x1x8x128xf32, #tpu.memory_space<vmem>>, vector<1x1x8x128xf32>,
    %cst_10 = arith.constant dense<0.000000e+00> : vector<8xf32>
    %8 = vector.multi_reduction <add>, %4, %cst_10 [1] : vector<8x128xf32> to vector<8xf32>
    %9 = vector.shape_cast %8 : vector<8xf32> to vector<8x1xf32>
    %c0_11 = arith.constant 0 : index
    %c0_12 = arith.constant 0 : index
    %c0_13 = arith.constant 0 : index
    %c0_14 = arith.constant 0 : index
    %c0_15 = arith.constant 0 : index
    %10 = vector.load %arg6[%c0_11, %c0_12, %c0_13, %c0_14, %c0_15] : memref<1x1x1x8x8xf32, #tpu.memory_space<vmem>>, vector<1x1x1x8x1xf32>
    %11 = vector.shape_cast %10 : vector<1x1x1x8x1xf32> to vector<8x1xf32>
    %12 = vector.shape_cast %9 : vector<8x1xf32> to vector<1x1x1x8x1xf32>
    tpu.vector_store %arg6[%c0_11, %c0_12, %c0_13, %c0_14, %c0_15], %12 {strides = array<i32>} : memref<1x1x1x8x8xf32, #tpu.memory_space<vmem>>, vector<1x1x1x8x1xf32>,
    %13 = arith.mulf %4, %4 : vector<8x128xf32>
    %cst_16 = arith.constant dense<0.000000e+00> : vector<8xf32>
    %14 = vector.multi_reduction <add>, %13, %cst_16 [1] : vector<8x128xf32> to vector<8xf32>
    %15 = vector.shape_cast %14 : vector<8xf32> to vector<8x1xf32>
    %c0_17 = arith.constant 0 : index
    %c0_18 = arith.constant 0 : index
    %c0_19 = arith.constant 0 : index
    %c0_20 = arith.constant 0 : index
    %c1 = arith.constant 1 : index
    %16 = vector.load %arg6[%c0_17, %c0_18, %c0_19, %c0_20, %c1] : memref<1x1x1x8x8xf32, #tpu.memory_space<vmem>>, vector<1x1x1x8x1xf32>
    %17 = vector.shape_cast %16 : vector<1x1x1x8x1xf32> to vector<8x1xf32>
    %18 = vector.shape_cast %15 : vector<8x1xf32> to vector<1x1x1x8x1xf32>
    tpu.vector_store %arg6[%c0_17, %c0_18, %c0_19, %c0_20, %c1], %18 {strides = array<i32>} : memref<1x1x1x8x8xf32, #tpu.memory_space<vmem>>, vector<1x1x1x8x1xf32>,
    return
  }
  func.func @transform_0(%arg0: i32, %arg1: i32, %arg2: i32) -> (i32, i32, i32, i32) {
    %c0_i32 = arith.constant 0 : i32
    %c0_i32_0 = arith.constant 0 : i32
    return %arg0, %arg1, %c0_i32, %arg2 : i32, i32, i32, i32
  }
  func.func @transform_1(%arg0: i32, %arg1: i32, %arg2: i32) -> (i32, i32, i32) {
    %c0_i32 = arith.constant 0 : i32
    %c0_i32_0 = arith.constant 0 : i32
    %c0_i32_1 = arith.constant 0 : i32
    return %arg1, %c0_i32, %c0_i32_0 : i32, i32, i32
  }
  func.func @transform_2(%arg0: i32, %arg1: i32, %arg2: i32) -> (i32, i32, i32, i32) {
    %c0_i32 = arith.constant 0 : i32
    %c0_i32_0 = arith.constant 0 : i32
    return %arg0, %arg1, %c0_i32, %arg2 : i32, i32, i32, i32
  }
  func.func @transform_3(%arg0: i32, %arg1: i32, %arg2: i32) -> (i32, i32, i32, i32, i32) {
    %c0_i32 = arith.constant 0 : i32
    %c0_i32_0 = arith.constant 0 : i32
    %c0_i32_1 = arith.constant 0 : i32
    return %arg0, %arg1, %arg2, %c0_i32, %c0_i32_0 : i32, i32, i32, i32, i32
  }
}

module attributes {stable_mosaic.version = 11 : i64} {
  func.func @bn_lrelu_concat_kernel(%arg0: i32, %arg1: i32, %arg2: memref<1x8x16x32xf32, #tpu.memory_space<vmem>>, %arg3: memref<1x4x16x32xf32, #tpu.memory_space<vmem>>, %arg4: memref<8x1x32xf32, #tpu.memory_space<vmem>>, %arg5: memref<8x1x32xf32, #tpu.memory_space<vmem>>, %arg6: memref<1x12x16x32xf32, #tpu.memory_space<vmem>>) attributes {dimension_semantics = [#tpu.dimension_semantics<parallel>, #tpu.dimension_semantics<parallel>], iteration_bounds = array<i64: 2, 2>, scalar_prefetch = 0 : i64, scratch_operands = 0 : i64, tpu.core_type = #tpu.core_type<tc>, window_params = [{transform_indices = @transform_0, window_bounds = array<i64: 1, 8, 16, 32>}, {transform_indices = @transform_1, window_bounds = array<i64: 1, 4, 16, 32>}, {pipeline_mode = #tpu.pipeline_mode<synchronous>, transform_indices = @transform_2, window_bounds = array<i64: 8, 1, 32>}, {pipeline_mode = #tpu.pipeline_mode<synchronous>, transform_indices = @transform_3, window_bounds = array<i64: 8, 1, 32>}, {transform_indices = @transform_4, window_bounds = array<i64: 1, 12, 16, 32>}]} {
    %c0 = arith.constant 0 : index
    %c0_0 = arith.constant 0 : index
    %c0_1 = arith.constant 0 : index
    %c0_2 = arith.constant 0 : index
    %0 = vector.load %arg2[%c0, %c0_0, %c0_1, %c0_2] : memref<1x8x16x32xf32, #tpu.memory_space<vmem>>, vector<1x8x16x32xf32>
    %1 = vector.shape_cast %0 : vector<1x8x16x32xf32> to vector<8x16x32xf32>
    %c0_3 = arith.constant 0 : index
    %c0_4 = arith.constant 0 : index
    %c0_5 = arith.constant 0 : index
    %2 = vector.load %arg4[%c0_3, %c0_4, %c0_5] : memref<8x1x32xf32, #tpu.memory_space<vmem>>, vector<8x1x32xf32>
    %3 = vector.broadcast %2 : vector<8x1x32xf32> to vector<8x16x32xf32>
    %4 = arith.mulf %1, %3 : vector<8x16x32xf32>
    %c0_6 = arith.constant 0 : index
    %c0_7 = arith.constant 0 : index
    %c0_8 = arith.constant 0 : index
    %5 = vector.load %arg5[%c0_6, %c0_7, %c0_8] : memref<8x1x32xf32, #tpu.memory_space<vmem>>, vector<8x1x32xf32>
    %6 = vector.broadcast %5 : vector<8x1x32xf32> to vector<8x16x32xf32>
    %7 = arith.addf %4, %6 : vector<8x16x32xf32>
    %cst = arith.constant 0.000000e+00 : f32
    %8 = vector.broadcast %cst : f32 to vector<8x16x32xf32>
    %9 = arith.cmpf oge, %7, %8 : vector<8x16x32xf32>
    %cst_9 = arith.constant 1.000000e-01 : f32
    %10 = vector.broadcast %cst_9 : f32 to vector<8x16x32xf32>
    %11 = arith.mulf %10, %7 : vector<8x16x32xf32>
    %12 = arith.select %9, %7, %11 : vector<8x16x32xi1>, vector<8x16x32xf32>
    %c0_10 = arith.constant 0 : index
    %c0_11 = arith.constant 0 : index
    %c0_12 = arith.constant 0 : index
    %c0_13 = arith.constant 0 : index
    %13 = vector.load %arg6[%c0_10, %c0_11, %c0_12, %c0_13] : memref<1x12x16x32xf32, #tpu.memory_space<vmem>>, vector<1x8x16x32xf32>
    %14 = vector.shape_cast %13 : vector<1x8x16x32xf32> to vector<8x16x32xf32>
    %15 = vector.shape_cast %12 : vector<8x16x32xf32> to vector<1x8x16x32xf32>
    tpu.vector_store %arg6[%c0_10, %c0_11, %c0_12, %c0_13], %15 {strides = array<i32>} : memref<1x12x16x32xf32, #tpu.memory_space<vmem>>, vector<1x8x16x32xf32>,
    %c0_14 = arith.constant 0 : index
    %c0_15 = arith.constant 0 : index
    %c0_16 = arith.constant 0 : index
    %c0_17 = arith.constant 0 : index
    %16 = vector.load %arg3[%c0_14, %c0_15, %c0_16, %c0_17] : memref<1x4x16x32xf32, #tpu.memory_space<vmem>>, vector<1x4x16x32xf32>
    %17 = vector.shape_cast %16 : vector<1x4x16x32xf32> to vector<4x16x32xf32>
    %c0_18 = arith.constant 0 : index
    %c8 = arith.constant 8 : index
    %c0_19 = arith.constant 0 : index
    %c0_20 = arith.constant 0 : index
    %18 = vector.load %arg6[%c0_18, %c8, %c0_19, %c0_20] : memref<1x12x16x32xf32, #tpu.memory_space<vmem>>, vector<1x4x16x32xf32>
    %19 = vector.shape_cast %18 : vector<1x4x16x32xf32> to vector<4x16x32xf32>
    %20 = vector.shape_cast %17 : vector<4x16x32xf32> to vector<1x4x16x32xf32>
    tpu.vector_store %arg6[%c0_18, %c8, %c0_19, %c0_20], %20 {strides = array<i32>} : memref<1x12x16x32xf32, #tpu.memory_space<vmem>>, vector<1x4x16x32xf32>,
    return
  }
  func.func @transform_0(%arg0: i32, %arg1: i32) -> (i32, i32, i32, i32) {
    %c0_i32 = arith.constant 0 : i32
    %c0_i32_0 = arith.constant 0 : i32
    %c0_i32_1 = arith.constant 0 : i32
    return %arg0, %c0_i32, %arg1, %c0_i32_0 : i32, i32, i32, i32
  }
  func.func @transform_1(%arg0: i32, %arg1: i32) -> (i32, i32, i32, i32) {
    %c0_i32 = arith.constant 0 : i32
    %c0_i32_0 = arith.constant 0 : i32
    %c0_i32_1 = arith.constant 0 : i32
    return %arg0, %c0_i32, %arg1, %c0_i32_0 : i32, i32, i32, i32
  }
  func.func @transform_2(%arg0: i32, %arg1: i32) -> (i32, i32, i32) {
    %c0_i32 = arith.constant 0 : i32
    %c0_i32_0 = arith.constant 0 : i32
    %c0_i32_1 = arith.constant 0 : i32
    %c0_i32_2 = arith.constant 0 : i32
    return %c0_i32, %c0_i32_0, %c0_i32_1 : i32, i32, i32
  }
  func.func @transform_3(%arg0: i32, %arg1: i32) -> (i32, i32, i32) {
    %c0_i32 = arith.constant 0 : i32
    %c0_i32_0 = arith.constant 0 : i32
    %c0_i32_1 = arith.constant 0 : i32
    %c0_i32_2 = arith.constant 0 : i32
    return %c0_i32, %c0_i32_0, %c0_i32_1 : i32, i32, i32
  }
  func.func @transform_4(%arg0: i32, %arg1: i32) -> (i32, i32, i32, i32) {
    %c0_i32 = arith.constant 0 : i32
    %c0_i32_0 = arith.constant 0 : i32
    %c0_i32_1 = arith.constant 0 : i32
    return %arg0, %c0_i32, %arg1, %c0_i32_0 : i32, i32, i32, i32
  }
}

</mosaic_0001>

<llo_original>
// kernel: _lambda_.2
$region0: #{_lambda_.2}
  #allocation0 [shape = 'u32[]', space=smem, size = 0x4, offset = 0x4, fixed_abs, tag = 'smem constant byte address 0x4 - core index']
  #allocation1 [shape = 'u32[144,128]{1,0:T(1,128)}', space=vmem, size = 0x12000, scoped, tag = 'internal scratch']
  %s0 = inlined_call_operand.vmem [shape: bf16[2,4,16,256], index: 0, kind: input, shape index: {}]
  %s1 = inlined_call_operand.vmem [shape: bf16[4,8,16], index: 1, kind: input, shape index: {}]
  %s2 = inlined_call_operand.vmem [shape: f32[2,4,8,256], index: 2, kind: output, shape index: {0}]
  %s3 = inlined_call_operand.vmem [shape: f32[2,4,2,8,8], index: 3, kind: output, shape index: {1}]
  %4 = xla_tuple %s2, %s3
  %s5 = sld [smem:[#allocation0]]
  $region90: #{_lambda_.2} parent=0
    _
  %s7 = ssub.s32 1, %s5
  %s8 = scalar_select 0, %s7, %s5
  $region1: #{_lambda_.2} parent=0
    #allocation2 [shape = 'u8[8192]{0}', space=vmem, size = 0x2000, scoped, tag = 'input window, operand 0']
    loop: start=0, step=1, limit=18
    $region2: #{_lambda_.2} parent=1 // loop_pre_header
      _
    $region3: #{_lambda_.2} parent=1 // loop_header
      %s10 = sphi 0, %s14
      %p11 = scmp.ge.s32.totalorder %s10, 18
      %s17 = sphi 0, %s36
      %s18 = sphi 0, %s32
      %s19 = sphi 0, %s28
      %s20 = sphi 0, %s17
      %s21 = sphi 0, %s18
      %s22 = sphi 0, %s19
      %s23 = sphi 0, %s20
      %s24 = sphi 0, %s21
      %s25 = sphi 0, %s22
      %s43 = sphi 0, %s45
      %s46 = sphi 0, %s43
      %s47 = sphi 0, %s46
      %s63 = sphi 0, %s47
      %s69 = sphi 0, %s71
      %s72 = sphi 0, %s69
      %s73 = sphi 0, %s72
      %s89 = sphi 0, %s73
      %s99 = sphi 0, %s101
      %s102 = sphi 0, %s99
      %s103 = sphi 0, %s102
      %s119 = sphi 0, %s103
      %s129 = sphi 0, %s131
      %s132 = sphi 0, %s129
      %s133 = sphi 0, %s132
      %s149 = sphi 0, %s133
    $region4: #{_lambda_.2} parent=1 // loop_header_branch
      %13 = sbr.rel (%p11) target = $region8
    $region5: #{_lambda_.2} parent=1 // loop_body
      %s15 = ssub.s32 %s10, 1
      %s16 = ssub.s32 %s10, 2
      %s26 = sadd.s32 1, %s19
      %p27 = scmp.ge.s32.totalorder %s26, 2
      %s28 = scalar_select %p27, 0, %s26
      %s29 = sadd.s32 1, %s18
      %s30 = scalar_select %p27, %s29, %s18
      %p31 = scmp.ge.s32.totalorder %s30, 4
      %s32 = scalar_select %p31, 0, %s30
      %s33 = sadd.s32 1, %s17
      %s34 = scalar_select %p31, %s33, %s17
      %p35 = scmp.ge.s32.totalorder %s34, 2
      %s36 = scalar_select %p35, 0, %s34
      %s37 = ssub.s32 %s17, %s36
      %s38 = ssub.s32 %s18, %s32
      %s39 = sor.u32 %s37, %s38
      %s40 = ssub.s32 %s19, %s28
      %s41 = sor.u32 %s39, %s40
      %p42 = scmp.eq.s32.totalorder %s41, 0
      %s44 = sadd.s32 %s43, 1
      %s45 = scalar_select %p42, %s43, %s44
      %p48 = pneg %p42
      %p49 = scmp.eq.s32.totalorder %s10, 15
      %p50 = por %p48, %p49
      %p51 = scmp.ne.s32.totalorder %s43, %s46
      %p52 = scmp.eq.s32.totalorder %s10, 0
      %p53 = por %p51, %p52
      %p54 = scmp.ne.s32.totalorder %s43, %s46
      %p55 = scmp.eq.s32.totalorder %s15, 15
      %p56 = por %p54, %p55
      %p57 = scmp.ne.s32.totalorder %s46, %s47
      %p58 = scmp.eq.s32.totalorder %s15, 0
      %p59 = por %p57, %p58
      %p60 = scmp.ne.s32.totalorder %s46, %s47
      %p61 = scmp.eq.s32.totalorder %s16, 15
      %p62 = por %p60, %p61
      %p64 = scmp.ne.s32.totalorder %s47, %s63
      %p65 = scmp.eq.s32.totalorder %s16, 0
      %p66 = por %p64, %p65
      %s67 = ssub.s32 %s18, %s32
      %p68 = scmp.eq.s32.totalorder %s67, 0
      %s70 = sadd.s32 %s69, 1
      %s71 = scalar_select %p68, %s69, %s70
      %p74 = pneg %p68
      %p75 = scmp.eq.s32.totalorder %s10, 15
      %p76 = por %p74, %p75
      %p77 = scmp.ne.s32.totalorder %s69, %s72
      %p78 = scmp.eq.s32.totalorder %s10, 0
      %p79 = por %p77, %p78
      %p80 = scmp.ne.s32.totalorder %s69, %s72
      %p81 = scmp.eq.s32.totalorder %s15, 15
      %p82 = por %p80, %p81
      %p83 = scmp.ne.s32.totalorder %s72, %s73
      %p84 = scmp.eq.s32.totalorder %s15, 0
      %p85 = por %p83, %p84
      %p86 = scmp.ne.s32.totalorder %s72, %s73
      %p87 = scmp.eq.s32.totalorder %s16, 15
      %p88 = por %p86, %p87
      %p90 = scmp.ne.s32.totalorder %s73, %s89
      %p91 = scmp.eq.s32.totalorder %s16, 0
      %p92 = por %p90, %p91
      %s93 = ssub.s32 %s17, %s36
      %s94 = ssub.s32 %s18, %s32
      %s95 = sor.u32 %s93, %s94
      %s96 = ssub.s32 %s19, %s28
      %s97 = sor.u32 %s95, %s96
      %p98 = scmp.eq.s32.totalorder %s97, 0
      %s100 = sadd.s32 %s99, 1
      %s101 = scalar_select %p98, %s99, %s100
      %p104 = pneg %p98
      %p105 = scmp.eq.s32.totalorder %s10, 15
      %p106 = por %p104, %p105
      %p107 = scmp.ne.s32.totalorder %s99, %s102
      %p108 = scmp.eq.s32.totalorder %s10, 0
      %p109 = por %p107, %p108
      %p110 = scmp.ne.s32.totalorder %s99, %s102
      %p111 = scmp.eq.s32.totalorder %s15, 15
      %p112 = por %p110, %p111
      %p113 = scmp.ne.s32.totalorder %s102, %s103
      %p114 = scmp.eq.s32.totalorder %s15, 0
      %p115 = por %p113, %p114
      %p116 = scmp.ne.s32.totalorder %s102, %s103
      %p117 = scmp.eq.s32.totalorder %s16, 15
      %p118 = por %p116, %p117
      %p120 = scmp.ne.s32.totalorder %s103, %s119
      %p121 = scmp.eq.s32.totalorder %s16, 0
      %p122 = por %p120, %p121
      %s123 = ssub.s32 %s17, %s36
      %s124 = ssub.s32 %s18, %s32
      %s125 = sor.u32 %s123, %s124
      %s126 = ssub.s32 %s19, %s28
      %s127 = sor.u32 %s125, %s126
      %p128 = scmp.eq.s32.totalorder %s127, 0
      %s130 = sadd.s32 %s129, 1
      %s131 = scalar_select %p128, %s129, %s130
      %p134 = pneg %p128
      %p135 = scmp.eq.s32.totalorder %s10, 15
      %p136 = por %p134, %p135
      %p137 = scmp.ne.s32.totalorder %s129, %s132
      %p138 = scmp.eq.s32.totalorder %s10, 0
      %p139 = por %p137, %p138
      %p140 = scmp.ne.s32.totalorder %s129, %s132
      %p141 = scmp.eq.s32.totalorder %s15, 15
      %p142 = por %p140, %p141
      %p143 = scmp.ne.s32.totalorder %s132, %s133
      %p144 = scmp.eq.s32.totalorder %s15, 0
      %p145 = por %p143, %p144
      %p146 = scmp.ne.s32.totalorder %s132, %s133
      %p147 = scmp.eq.s32.totalorder %s16, 15
      %p148 = por %p146, %p147
      %p150 = scmp.ne.s32.totalorder %s133, %s149
      %p151 = scmp.eq.s32.totalorder %s16, 0
      %p152 = por %p150, %p151
      %p153 = scmp.le.s32.totalorder 1, %s10
      %p154 = scmp.lt.s32.totalorder %s10, 17
      %p155 = pnand %p153, %p154
      %p156 = pneg %p155
      // Predicated region
      $region9: #{_lambda_.2} parent=5 // pred_check
        _
      $region10: #{_lambda_.2} parent=5 // pred_check_branch
        %158 = sbr.rel (%p155) target = $region12
      $region11: #{_lambda_.2} parent=5 // pred_region
        %s159 = ssub.s32 %s10, 1
      $region12: #{_lambda_.2} parent=5 // pred_fallthru
        _
      %p160 = scmp.lt.s32.totalorder %s10, 16
      // Predicated region
      $region13: #{_lambda_.2} parent=5 // pred_check
        %p161 = pneg %p160
      $region14: #{_lambda_.2} parent=5 // pred_check_branch
        %163 = sbr.rel (%p161) target = $region16
      $region15: #{_lambda_.2} parent=5 // pred_region
        // Predicated region
        $region17: #{_lambda_.2} parent=15 // pred_check
          %p164 = pneg %p53
        $region18: #{_lambda_.2} parent=15 // pred_check_branch
          %166 = sbr.rel (%p164) target = $region20
        $region19: #{_lambda_.2} parent=15 // pred_region
          %s167 = sand.u32 %s43, 1
          %s168 = sand.u32 %s43, 1
          %s169 = smul.addr %s168, 8
          %s170 = scalar_lea.vmem [#allocation2], %s169
          %s171 = smul.addr %s18, 4
          %s172 = sadd.s32 %s19, %s171
          %s173 = smul.addr %s17, 16
          %s174 = sadd.s32 %s172, %s173
          %s175 = smul.addr %s174, 4
          %s176 = scalar_lea.vmem %s0, %s175
          // Predicated region
          $region21: #{_lambda_.2} parent=19 // pred_check
            _
          $region22: #{_lambda_.2} parent=19 // pred_check_branch
            %178 = sbr.rel (0) target = $region24
          $region23: #{_lambda_.2} parent=19 // pred_region
            // Predicated region
            $region25: #{_lambda_.2} parent=23 // pred_check
              _
            $region26: #{_lambda_.2} parent=23 // pred_check_branch
              %180 = sbr.rel target = $region28
            $region27: #{_lambda_.2} parent=23 // pred_region
              // Predicated region
              $region40: #{_lambda_.2} parent=27 // pred_check
                _
              $region41: #{_lambda_.2} parent=27 // pred_check_branch
                %198 = sbr.rel (0) target = $region43
              $region42: #{_lambda_.2} parent=27 // pred_region
                loop: start=0, step=1, limit=1
                $region44: #{_lambda_.2} parent=42 // loop_pre_header
                  _
                $region45: #{_lambda_.2} parent=42 // loop_header
                  %s200 = sphi 0, %s204
                  %p201 = scmp.ge.s32.totalorder %s200, 1
                  %s205 = sphi %s176, %s176
                  %s206 = sphi %s170, %s170
                $region46: #{_lambda_.2} parent=42 // loop_header_branch
                  %203 = sbr.rel (%p201) target = $region50
                $region47: #{_lambda_.2} parent=42 // loop_body
                  _
                $region48: #{_lambda_.2} parent=42 // loop_footer
                  %s204 = sadd.s32 1, %s200
                $region49: #{_lambda_.2} parent=42 // loop_footer_branch
                  %199 = sbr.rel target = $region45
                $region50: #{_lambda_.2} parent=42 // loop_exit
                  _
                %s208 = ssub.s32 16, 1
                loop: start=0, step=1, limit=1
                $region51: #{_lambda_.2} parent=42 // loop_pre_header
                  _
                $region52: #{_lambda_.2} parent=42 // loop_header
                  %s210 = sphi 0, %s214
                  %p211 = scmp.ge.s32.totalorder %s210, 1
                  %s215 = sphi %s176, %s176
                  %s216 = sphi %s170, %s170
                $region53: #{_lambda_.2} parent=42 // loop_header_branch
                  %213 = sbr.rel (%p211) target = $region57
                $region54: #{_lambda_.2} parent=42 // loop_body
                  %v217 = vld [vmem:[%s215] sm:%s208]
                  %218 = vst [vmem:[%s216] sm:%s208] %v217
                  %v219 = vld [vmem:[%s215 + $0x8] sm:%s208]
                  %220 = vst [vmem:[%s216 + $0x4] sm:%s208] %v219
                $region55: #{_lambda_.2} parent=42 // loop_footer
                  %s214 = sadd.s32 1, %s210
                $region56: #{_lambda_.2} parent=42 // loop_footer_branch
                  %209 = sbr.rel target = $region52
                $region57: #{_lambda_.2} parent=42 // loop_exit
                  _
              $region43: #{_lambda_.2} parent=27 // pred_fallthru
                _
            $region28: #{_lambda_.2} parent=23 // pred_fallthru
              _
            // Predicated region
            $region29: #{_lambda_.2} parent=23 // pred_check
              _
            $region30: #{_lambda_.2} parent=23 // pred_check_branch
              %182 = sbr.rel (0) target = $region32
            $region31: #{_lambda_.2} parent=23 // pred_region
              %s184 = ssub.s32 16, 1
              loop: start=0, step=1, limit=1
              $region33: #{_lambda_.2} parent=31 // loop_pre_header
                _
              $region34: #{_lambda_.2} parent=31 // loop_header
                %s186 = sphi 0, %s190
                %p187 = scmp.ge.s32.totalorder %s186, 1
                %s191 = sphi %s176, %s176
                %s192 = sphi %s170, %s170
              $region35: #{_lambda_.2} parent=31 // loop_header_branch
                %189 = sbr.rel (%p187) target = $region39
              $region36: #{_lambda_.2} parent=31 // loop_body
                %v193 = vld [vmem:[%s191] sm:%s184]
                %194 = vst [vmem:[%s192] sm:%s184] %v193
                %v195 = vld [vmem:[%s191 + $0x8] sm:%s184]
                %196 = vst [vmem:[%s192 + $0x4] sm:%s184] %v195
              $region37: #{_lambda_.2} parent=31 // loop_footer
                %s190 = sadd.s32 1, %s186
              $region38: #{_lambda_.2} parent=31 // loop_footer_branch
                %185 = sbr.rel target = $region34
              $region39: #{_lambda_.2} parent=31 // loop_exit
                _
            $region32: #{_lambda_.2} parent=23 // pred_fallthru
              _
          $region24: #{_lambda_.2} parent=19 // pred_fallthru
            _
          %221 = vnop
        $region20: #{_lambda_.2} parent=15 // pred_fallthru
          _
        // Predicated region
        $region58: #{_lambda_.2} parent=15 // pred_check
          %p222 = pneg %p79
        $region59: #{_lambda_.2} parent=15 // pred_check_branch
          %224 = sbr.rel (%p222) target = $region61
        $region60: #{_lambda_.2} parent=15 // pred_region
          %p225 = scmp.lt.s32.totalorder %s18, 3
          %s226 = scalar_select %p225, %s18, 3
          %s227 = smul.addr %s226, 4
          %s228 = scalar_lea.vmem %s1, %s227
        $region61: #{_lambda_.2} parent=15 // pred_fallthru
          _
      $region16: #{_lambda_.2} parent=5 // pred_fallthru
        _
      %p229 = scmp.le.s32.totalorder 1, %s10
      %p230 = scmp.lt.s32.totalorder %s10, 17
      %p231 = pnand %p229, %p230
      %p232 = pneg %p231
      // Predicated region
      $region62: #{_lambda_.2} parent=5 // pred_check
        _
      $region63: #{_lambda_.2} parent=5 // pred_check_branch
        %234 = sbr.rel (%p231) target = $region65
      $region64: #{_lambda_.2} parent=5 // pred_region
        %s235 = ssub.s32 %s10, 1
        %s236 = sand.u32 %s46, 1
        %s237 = sand.u32 %s46, 1
        %s238 = smul.addr %s237, 8
        %s239 = scalar_lea.vmem [#allocation2], %s238
        // Predicated region
        $region66: #{_lambda_.2} parent=64 // pred_check
          %p240 = pneg %p59
        $region67: #{_lambda_.2} parent=64 // pred_check_branch
          %242 = sbr.rel (%p240) target = $region69
        $region68: #{_lambda_.2} parent=64 // pred_region
          _
        $region69: #{_lambda_.2} parent=64 // pred_fallthru
          _
        %s243 = sand.u32 %s46, 1
        %s244 = sand.u32 %s46, 1
        %s245 = smul.addr %s244, 8
        %s246 = scalar_lea.vmem [#allocation2], %s245
        %p247 = pneg %p59
        %p248 = pneg %p56
        %p249 = scmp.lt.s32.totalorder %s21, 3
        %s250 = scalar_select %p249, %s21, 3
        %s251 = smul.addr %s250, 4
        %s252 = scalar_lea.vmem %s1, %s251
        %p253 = pneg %p85
        %p254 = pneg %p82
        %p255 = pneg %p115
        %p256 = pneg %p112
        %p257 = scmp.lt.s32.totalorder %s20, 1
        %s258 = scalar_select %p257, %s20, 1
        %p259 = scmp.lt.s32.totalorder %s21, 3
        %s260 = scalar_select %p259, %s21, 3
        %p261 = scmp.lt.s32.totalorder %s22, 1
        %s262 = scalar_select %p261, %s22, 1
        %s263 = smul.addr %s260, 2
        %s264 = sadd.s32 %s262, %s263
        %s265 = smul.addr %s258, 8
        %s266 = sadd.s32 %s264, %s265
        %s267 = smul.addr %s266, 8
        %s268 = scalar_lea.vmem %s2, %s267
        %p269 = pneg %p145
        %p270 = pneg %p142
        %p271 = scmp.lt.s32.totalorder %s20, 1
        %s272 = scalar_select %p271, %s20, 1
        %p273 = scmp.lt.s32.totalorder %s21, 3
        %s274 = scalar_select %p273, %s21, 3
        %p275 = scmp.lt.s32.totalorder %s22, 1
        %s276 = scalar_select %p275, %s22, 1
        %s277 = smul.addr %s274, 2
        %s278 = sadd.s32 %s276, %s277
        %s279 = smul.addr %s272, 8
        %s280 = sadd.s32 %s278, %s279
        %s281 = smul.addr %s280, 8
        %s282 = scalar_lea.vmem %s3, %s281
        %p283 = scmp.lt.s32.totalorder %s21, 3
        %s284 = scalar_select %p283, %s21, 3
        %s285 = smul.addr %s284, 4
        %s286 = scalar_lea.vmem %s1, %s285
        %p287 = scmp.lt.s32.totalorder %s20, 1
        %s288 = scalar_select %p287, %s20, 1
        %p289 = scmp.lt.s32.totalorder %s21, 3
        %s290 = scalar_select %p289, %s21, 3
        %p291 = scmp.lt.s32.totalorder %s22, 1
        %s292 = scalar_select %p291, %s22, 1
        %s293 = smul.addr %s290, 2
        %s294 = sadd.s32 %s292, %s293
        %s295 = smul.addr %s288, 8
        %s296 = sadd.s32 %s294, %s295
        %s297 = smul.addr %s296, 8
        %s298 = scalar_lea.vmem %s2, %s297
        %p299 = scmp.lt.s32.totalorder %s20, 1
        %s300 = scalar_select %p299, %s20, 1
        %p301 = scmp.lt.s32.totalorder %s21, 3
        %s302 = scalar_select %p301, %s21, 3
        %p303 = scmp.lt.s32.totalorder %s22, 1
        %s304 = scalar_select %p303, %s22, 1
        %s305 = smul.addr %s302, 2
        %s306 = sadd.s32 %s304, %s305
        %s307 = smul.addr %s300, 8
        %s308 = sadd.s32 %s306, %s307
        %s309 = smul.addr %s308, 8
        %s310 = scalar_lea.vmem %s3, %s309
        %v312 = vld [vmem:[%s286] sm:$0xf]
        %v313 = vld [vmem:[%s239] sm:$0xf]
        %v314 = vld [vmem:[%s239 + $0x4] sm:$0xf]
        %v317 = vunpack.c.l.b16 %v313
        %v318 = vunpack.c.l.b16 %v314
        %v319 = vpack.c.b16 %v318, %v317
        %vm321 = vcmask 130048
        %v323 = vsel %vm321, %v312, 0
        %325 = vmatprep.subr.bf16.mxu0 0
        %326 = vmatpush1.bf16.msra.mxu0 0
        %327 = vmatprep.subr.bf16.mxu0 0
        %328 = vmatpush1.bf16.msra.mxu0 0
        %329 = vmatprep.subr.bf16.mxu0 0
        %330 = vmatpush1.bf16.msra.mxu0 0
        %331 = vmatprep.subr.bf16.mxu0 0
        %332 = vmatpush1.bf16.msra.mxu0 0
        %333 = vmatprep.subr.bf16.mxu0 0
        %334 = vmatpush1.bf16.msra.mxu0 0
        %335 = vmatprep.subr.bf16.mxu0 0
        %336 = vmatpush1.bf16.msra.mxu0 0
        %337 = vmatprep.subr.bf16.mxu0 0
        %338 = vmatpush1.bf16.msra.mxu0 0
        %339 = vmatprep.subr.bf16.mxu0 0
        %340 = vmatpush1.bf16.msra.mxu0 %v319
        %341 = vmatprep.subr.bf16.mxu0 0
        %342 = vmatpush2.bf16.msra.mxu0 0
        %343 = vmatprep.subr.bf16.mxu0 0
        %344 = vmatpush2.bf16.msra.mxu0 0
        %345 = vmatprep.subr.bf16.mxu0 0
        %346 = vmatpush2.bf16.msra.mxu0 0
        %347 = vmatprep.subr.bf16.mxu0 0
        %348 = vmatpush2.bf16.msra.mxu0 0
        %349 = vmatprep.subr.bf16.mxu0 0
        %350 = vmatpush2.bf16.msra.mxu0 0
        %351 = vmatprep.subr.bf16.mxu0 0
        %352 = vmatpush2.bf16.msra.mxu0 0
        %353 = vmatprep.subr.bf16.mxu0 0
        %354 = vmatpush2.bf16.msra.mxu0 0
        %355 = vmatprep.subr.bf16.mxu0 0
        %356 = vmatpush2.bf16.msra.mxu0 0
        %357 = vmatprep.mubr.bf16.mxu0 0
        %358 = vmatmul.mubr.bf16.gmra.mxu0 %v323
        %v359 = vpop.f32.mrf.mxu0
        %v360 = vadd.f32 0.0, %v359
        %v361 = vpop.f32.mrf.mxu0
        %v362 = vpop.f32.mrf.mxu0
        %v363 = vpop.f32.mrf.mxu0
        %364 = vdwg.mxu0
        %365 = vst [vmem:[%s298] sm:$0xff] %v360
        %366 = vadd.xlane.f32.xlu0 %v360
        %v367 = vpop.xlane.xlu0 %366
        %vm368 = vcmask 7168
        %369 = vst.msk [vmem:[%s310] sm:$0xff] %vm368, %v367
        %v370 = vmul.f32 %v360, %v360
        %371 = vadd.xlane.f32.xlu0 %v370
        %v372 = vpop.xlane.xlu0 %371
        %vm373 = vcmask 15368
        %374 = vst.msk [vmem:[%s310] sm:$0xff] %vm373, %v372
        %p375 = scmp.lt.s32.totalorder %s20, 1
        %s376 = scalar_select %p375, %s20, 1
        %p377 = scmp.lt.s32.totalorder %s21, 3
        %s378 = scalar_select %p377, %s21, 3
        %p379 = scmp.lt.s32.totalorder %s22, 1
        %s380 = scalar_select %p379, %s22, 1
        %s381 = smul.addr %s378, 2
        %s382 = sadd.s32 %s380, %s381
        %s383 = smul.addr %s376, 8
        %s384 = sadd.s32 %s382, %s383
        %s385 = smul.addr %s384, 8
        %s386 = scalar_lea.vmem %s2, %s385
        %p387 = scmp.lt.s32.totalorder %s20, 1
        %s388 = scalar_select %p387, %s20, 1
        %p389 = scmp.lt.s32.totalorder %s21, 3
        %s390 = scalar_select %p389, %s21, 3
        %p391 = scmp.lt.s32.totalorder %s22, 1
        %s392 = scalar_select %p391, %s22, 1
        %s393 = smul.addr %s390, 2
        %s394 = sadd.s32 %s392, %s393
        %s395 = smul.addr %s388, 8
        %s396 = sadd.s32 %s394, %s395
        %s397 = smul.addr %s396, 8
        %s398 = scalar_lea.vmem %s3, %s397
        // Predicated region
        $region70: #{_lambda_.2} parent=64 // pred_check
          %p399 = pneg %p112
        $region71: #{_lambda_.2} parent=64 // pred_check_branch
          %401 = sbr.rel (%p399) target = $region73
        $region72: #{_lambda_.2} parent=64 // pred_region
          _
        $region73: #{_lambda_.2} parent=64 // pred_fallthru
          _
        // Predicated region
        $region74: #{_lambda_.2} parent=64 // pred_check
          %p402 = pneg %p142
        $region75: #{_lambda_.2} parent=64 // pred_check_branch
          %404 = sbr.rel (%p402) target = $region77
        $region76: #{_lambda_.2} parent=64 // pred_region
          _
        $region77: #{_lambda_.2} parent=64 // pred_fallthru
          _
      $region65: #{_lambda_.2} parent=5 // pred_fallthru
        _
      %p405 = scmp.le.s32.totalorder 2, %s10
      // Predicated region
      $region78: #{_lambda_.2} parent=5 // pred_check
        %p406 = pneg %p405
      $region79: #{_lambda_.2} parent=5 // pred_check_branch
        %408 = sbr.rel (%p406) target = $region81
      $region80: #{_lambda_.2} parent=5 // pred_region
        %s409 = ssub.s32 %s10, 2
        // Predicated region
        $region82: #{_lambda_.2} parent=80 // pred_check
          %p410 = pneg %p118
        $region83: #{_lambda_.2} parent=80 // pred_check_branch
          %412 = sbr.rel (%p410) target = $region85
        $region84: #{_lambda_.2} parent=80 // pred_region
          %p413 = scmp.lt.s32.totalorder %s23, 1
          %s414 = scalar_select %p413, %s23, 1
          %p415 = scmp.lt.s32.totalorder %s24, 3
          %s416 = scalar_select %p415, %s24, 3
          %p417 = scmp.lt.s32.totalorder %s25, 1
          %s418 = scalar_select %p417, %s25, 1
          %s419 = smul.addr %s416, 2
          %s420 = sadd.s32 %s418, %s419
          %s421 = smul.addr %s414, 8
          %s422 = sadd.s32 %s420, %s421
          %s423 = smul.addr %s422, 8
          %s424 = scalar_lea.vmem %s2, %s423
        $region85: #{_lambda_.2} parent=80 // pred_fallthru
          _
        // Predicated region
        $region86: #{_lambda_.2} parent=80 // pred_check
          %p425 = pneg %p148
        $region87: #{_lambda_.2} parent=80 // pred_check_branch
          %427 = sbr.rel (%p425) target = $region89
        $region88: #{_lambda_.2} parent=80 // pred_region
          %p428 = scmp.lt.s32.totalorder %s23, 1
          %s429 = scalar_select %p428, %s23, 1
          %p430 = scmp.lt.s32.totalorder %s24, 3
          %s431 = scalar_select %p430, %s24, 3
          %p432 = scmp.lt.s32.totalorder %s25, 1
          %s433 = scalar_select %p432, %s25, 1
          %s434 = smul.addr %s431, 2
          %s435 = sadd.s32 %s433, %s434
          %s436 = smul.addr %s429, 8
          %s437 = sadd.s32 %s435, %s436
          %s438 = smul.addr %s437, 8
          %s439 = scalar_lea.vmem %s3, %s438
        $region89: #{_lambda_.2} parent=80 // pred_fallthru
          _
      $region81: #{_lambda_.2} parent=5 // pred_fallthru
        _
    $region6: #{_lambda_.2} parent=1 // loop_footer
      %s14 = sadd.s32 1, %s10
    $region7: #{_lambda_.2} parent=1 // loop_footer_branch
      %9 = sbr.rel target = $region3
    $region8: #{_lambda_.2} parent=1 // loop_exit
      _

// kernel: _lambda_.3
$region0: #{_lambda_.3}
  #allocation0 [shape = 'u32[]', space=smem, size = 0x4, offset = 0x4, fixed_abs, tag = 'smem constant byte address 0x4 - core index']
  #allocation1 [shape = 'u32[144,128]{1,0:T(1,128)}', space=vmem, size = 0x12000, scoped, tag = 'internal scratch']
  #allocation6 [shape = 's32[]', space=sflag, size = 0x4, offset = 0, fixed_abs, tag = 'sflag constant byte address 0x0 - dummy sync flag']
  %s0 = inlined_call_operand.vmem [shape: f32[2,8,32,32], index: 0, kind: input, shape index: {}]
  %s1 = inlined_call_operand.vmem [shape: f32[2,4,32,32], index: 1, kind: input, shape index: {}]
  %s2 = inlined_call_operand.vmem [shape: f32[8,1,32], index: 2, kind: input, shape index: {}]
  %s3 = inlined_call_operand.vmem [shape: f32[8,1,32], index: 3, kind: input, shape index: {}]
  %s4 = inlined_call_operand.hbm [shape: f32[2,12,32,32], index: 4, kind: output, shape index: {}]
  %s5 = sld [smem:[#allocation0]]
  $region125: #{_lambda_.3} parent=0
    _
  %s7 = ssub.s32 1, %s5
  %s8 = scalar_select 0, %s7, %s5
  $region1: #{_lambda_.3} parent=0
    #allocation2 [shape = 'u8[131072]{0}', space=vmem, size = 0x20000, scoped, tag = 'input window, operand 0']
    #allocation3 [shape = 'u8[65536]{0}', space=vmem, size = 0x10000, scoped, tag = 'input window, operand 1']
    #allocation4 [shape = 'u8[196608]{0}', space=vmem, size = 0x30000, scoped, tag = 'output window, operand 0']
    #allocation5 [shape = 's32[2]{0}', space=sflag, size = 0x8, scoped, tag = 'scoped memory for _lambda_.3']
    %9 = vsyncpa [#allocation5], 0
    %s10 = scalar_lea.sflag [#allocation5], 1
    %11 = vsyncpa %s10, 0
    loop: start=0, step=1, limit=6
    $region2: #{_lambda_.3} parent=1 // loop_pre_header
      _
    $region3: #{_lambda_.3} parent=1 // loop_header
      %s13 = sphi 0, %s17
      %p14 = scmp.ge.s32.totalorder %s13, 6
      %s20 = sphi 0, %s32
      %s21 = sphi 0, %s28
      %s22 = sphi 0, %s20
      %s23 = sphi 0, %s21
      %s24 = sphi 0, %s22
      %s25 = sphi 0, %s23
      %s37 = sphi 0, %s39
      %s40 = sphi 0, %s37
      %s41 = sphi 0, %s40
      %s57 = sphi 0, %s41
      %s65 = sphi 0, %s67
      %s68 = sphi 0, %s65
      %s69 = sphi 0, %s68
      %s85 = sphi 0, %s69
      %s89 = sphi 0, %s89
      %s91 = sphi 0, %s89
      %s92 = sphi 0, %s91
      %s106 = sphi 0, %s92
      %s110 = sphi 0, %s110
      %s112 = sphi 0, %s110
      %s113 = sphi 0, %s112
      %s127 = sphi 0, %s113
      %s135 = sphi 0, %s137
      %s138 = sphi 0, %s135
      %s139 = sphi 0, %s138
      %s155 = sphi 0, %s139
    $region4: #{_lambda_.3} parent=1 // loop_header_branch
      %16 = sbr.rel (%p14) target = $region8
    $region5: #{_lambda_.3} parent=1 // loop_body
      %s18 = ssub.s32 %s13, 1
      %s19 = ssub.s32 %s13, 2
      %s26 = sadd.s32 1, %s21
      %p27 = scmp.ge.s32.totalorder %s26, 2
      %s28 = scalar_select %p27, 0, %s26
      %s29 = sadd.s32 1, %s20
      %s30 = scalar_select %p27, %s29, %s20
      %p31 = scmp.ge.s32.totalorder %s30, 2
      %s32 = scalar_select %p31, 0, %s30
      %s33 = ssub.s32 %s20, %s32
      %s34 = ssub.s32 %s21, %s28
      %s35 = sor.u32 %s33, %s34
      %p36 = scmp.eq.s32.totalorder %s35, 0
      %s38 = sadd.s32 %s37, 1
      %s39 = scalar_select %p36, %s37, %s38
      %p42 = pneg %p36
      %p43 = scmp.eq.s32.totalorder %s13, 3
      %p44 = por %p42, %p43
      %p45 = scmp.ne.s32.totalorder %s37, %s40
      %p46 = scmp.eq.s32.totalorder %s13, 0
      %p47 = por %p45, %p46
      %p48 = scmp.ne.s32.totalorder %s37, %s40
      %p49 = scmp.eq.s32.totalorder %s18, 3
      %p50 = por %p48, %p49
      %p51 = scmp.ne.s32.totalorder %s40, %s41
      %p52 = scmp.eq.s32.totalorder %s18, 0
      %p53 = por %p51, %p52
      %p54 = scmp.ne.s32.totalorder %s40, %s41
      %p55 = scmp.eq.s32.totalorder %s19, 3
      %p56 = por %p54, %p55
      %p58 = scmp.ne.s32.totalorder %s41, %s57
      %p59 = scmp.eq.s32.totalorder %s19, 0
      %p60 = por %p58, %p59
      %s61 = ssub.s32 %s20, %s32
      %s62 = ssub.s32 %s21, %s28
      %s63 = sor.u32 %s61, %s62
      %p64 = scmp.eq.s32.totalorder %s63, 0
      %s66 = sadd.s32 %s65, 1
      %s67 = scalar_select %p64, %s65, %s66
      %p70 = pneg %p64
      %p71 = scmp.eq.s32.totalorder %s13, 3
      %p72 = por %p70, %p71
      %p73 = scmp.ne.s32.totalorder %s65, %s68
      %p74 = scmp.eq.s32.totalorder %s13, 0
      %p75 = por %p73, %p74
      %p76 = scmp.ne.s32.totalorder %s65, %s68
      %p77 = scmp.eq.s32.totalorder %s18, 3
      %p78 = por %p76, %p77
      %p79 = scmp.ne.s32.totalorder %s68, %s69
      %p80 = scmp.eq.s32.totalorder %s18, 0
      %p81 = por %p79, %p80
      %p82 = scmp.ne.s32.totalorder %s68, %s69
      %p83 = scmp.eq.s32.totalorder %s19, 3
      %p84 = por %p82, %p83
      %p86 = scmp.ne.s32.totalorder %s69, %s85
      %p87 = scmp.eq.s32.totalorder %s19, 0
      %p88 = por %p86, %p87
      %s90 = sadd.s32 %s89, 1
      %p93 = scmp.eq.s32.totalorder %s13, 3
      %p94 = scmp.ne.s32.totalorder %s89, %s91
      %p95 = scmp.eq.s32.totalorder %s13, 0
      %p96 = por %p94, %p95
      %p97 = scmp.ne.s32.totalorder %s89, %s91
      %p98 = scmp.eq.s32.totalorder %s18, 3
      %p99 = por %p97, %p98
      %p100 = scmp.ne.s32.totalorder %s91, %s92
      %p101 = scmp.eq.s32.totalorder %s18, 0
      %p102 = por %p100, %p101
      %p103 = scmp.ne.s32.totalorder %s91, %s92
      %p104 = scmp.eq.s32.totalorder %s19, 3
      %p105 = por %p103, %p104
      %p107 = scmp.ne.s32.totalorder %s92, %s106
      %p108 = scmp.eq.s32.totalorder %s19, 0
      %p109 = por %p107, %p108
      %s111 = sadd.s32 %s110, 1
      %p114 = scmp.eq.s32.totalorder %s13, 3
      %p115 = scmp.ne.s32.totalorder %s110, %s112
      %p116 = scmp.eq.s32.totalorder %s13, 0
      %p117 = por %p115, %p116
      %p118 = scmp.ne.s32.totalorder %s110, %s112
      %p119 = scmp.eq.s32.totalorder %s18, 3
      %p120 = por %p118, %p119
      %p121 = scmp.ne.s32.totalorder %s112, %s113
      %p122 = scmp.eq.s32.totalorder %s18, 0
      %p123 = por %p121, %p122
      %p124 = scmp.ne.s32.totalorder %s112, %s113
      %p125 = scmp.eq.s32.totalorder %s19, 3
      %p126 = por %p124, %p125
      %p128 = scmp.ne.s32.totalorder %s113, %s127
      %p129 = scmp.eq.s32.totalorder %s19, 0
      %p130 = por %p128, %p129
      %s131 = ssub.s32 %s20, %s32
      %s132 = ssub.s32 %s21, %s28
      %s133 = sor.u32 %s131, %s132
      %p134 = scmp.eq.s32.totalorder %s133, 0
      %s136 = sadd.s32 %s135, 1
      %s137 = scalar_select %p134, %s135, %s136
      %p140 = pneg %p134
      %p141 = scmp.eq.s32.totalorder %s13, 3
      %p142 = por %p140, %p141
      %p143 = scmp.ne.s32.totalorder %s135, %s138
      %p144 = scmp.eq.s32.totalorder %s13, 0
      %p145 = por %p143, %p144
      %p146 = scmp.ne.s32.totalorder %s135, %s138
      %p147 = scmp.eq.s32.totalorder %s18, 3
      %p148 = por %p146, %p147
      %p149 = scmp.ne.s32.totalorder %s138, %s139
      %p150 = scmp.eq.s32.totalorder %s18, 0
      %p151 = por %p149, %p150
      %p152 = scmp.ne.s32.totalorder %s138, %s139
      %p153 = scmp.eq.s32.totalorder %s19, 3
      %p154 = por %p152, %p153
      %p156 = scmp.ne.s32.totalorder %s139, %s155
      %p157 = scmp.eq.s32.totalorder %s19, 0
      %p158 = por %p156, %p157
      %p159 = scmp.le.s32.totalorder 1, %s13
      %p160 = scmp.lt.s32.totalorder %s13, 5
      %p161 = pnand %p159, %p160
      %p162 = pneg %p161
      // Predicated region
      $region9: #{_lambda_.3} parent=5 // pred_check
        _
      $region10: #{_lambda_.3} parent=5 // pred_check_branch
        %164 = sbr.rel (%p161) target = $region12
      $region11: #{_lambda_.3} parent=5 // pred_region
        %s165 = ssub.s32 %s13, 1
        // Predicated region
        $region13: #{_lambda_.3} parent=11 // pred_check
          %p166 = pneg %p102
        $region14: #{_lambda_.3} parent=11 // pred_check_branch
          %168 = sbr.rel (%p166) target = $region16
        $region15: #{_lambda_.3} parent=11 // pred_region
          _
        $region16: #{_lambda_.3} parent=11 // pred_fallthru
          _
        // Predicated region
        $region17: #{_lambda_.3} parent=11 // pred_check
          %p169 = pneg %p123
        $region18: #{_lambda_.3} parent=11 // pred_check_branch
          %171 = sbr.rel (%p169) target = $region20
        $region19: #{_lambda_.3} parent=11 // pred_region
          _
        $region20: #{_lambda_.3} parent=11 // pred_fallthru
          _
      $region12: #{_lambda_.3} parent=5 // pred_fallthru
        _
      %p172 = scmp.lt.s32.totalorder %s13, 4
      // Predicated region
      $region21: #{_lambda_.3} parent=5 // pred_check
        %p173 = pneg %p172
      $region22: #{_lambda_.3} parent=5 // pred_check_branch
        %175 = sbr.rel (%p173) target = $region24
      $region23: #{_lambda_.3} parent=5 // pred_region
        // Predicated region
        $region25: #{_lambda_.3} parent=23 // pred_check
          %p176 = pneg %p47
        $region26: #{_lambda_.3} parent=23 // pred_check_branch
          %178 = sbr.rel (%p176) target = $region28
        $region27: #{_lambda_.3} parent=23 // pred_region
          %s179 = sand.u32 %s37, 1
          %s180 = sand.u32 %s37, 1
          %s181 = smul.addr %s180, 128
          %s182 = scalar_lea.vmem [#allocation2], %s181
          %s183 = smul.u32 2, %s21
          %s184 = smul.addr %s20, 32
          %s185 = sadd.s32 %s183, %s184
          %s186 = smul.addr %s185, 8
          %s187 = scalar_lea.vmem %s0, %s186
          // Predicated region
          $region29: #{_lambda_.3} parent=27 // pred_check
            _
          $region30: #{_lambda_.3} parent=27 // pred_check_branch
            %189 = sbr.rel (0) target = $region32
          $region31: #{_lambda_.3} parent=27 // pred_region
            // Predicated region
            $region33: #{_lambda_.3} parent=31 // pred_check
              _
            $region34: #{_lambda_.3} parent=31 // pred_check_branch
              %191 = sbr.rel (0) target = $region36
            $region35: #{_lambda_.3} parent=31 // pred_region
              // Predicated region
              $region48: #{_lambda_.3} parent=35 // pred_check
                _
              $region49: #{_lambda_.3} parent=35 // pred_check_branch
                %237 = sbr.rel (0) target = $region51
              $region50: #{_lambda_.3} parent=35 // pred_region
                loop: start=0, step=1, limit=1
                $region52: #{_lambda_.3} parent=50 // loop_pre_header
                  _
                $region53: #{_lambda_.3} parent=50 // loop_header
                  %s239 = sphi 0, %s243
                  %p240 = scmp.ge.s32.totalorder %s239, 1
                  %s244 = sphi %s187, %s187
                  %s245 = sphi %s182, %s182
                $region54: #{_lambda_.3} parent=50 // loop_header_branch
                  %242 = sbr.rel (%p240) target = $region58
                $region55: #{_lambda_.3} parent=50 // loop_body
                  %v246 = vld [vmem:[%s244] sm:$0xff]
                  %247 = vst [vmem:[%s245] sm:$0xff] %v246
                  %v248 = vld [vmem:[%s244 + $0x8] sm:$0xff]
                  %249 = vst [vmem:[%s245 + $0x8] sm:$0xff] %v248
                  %v250 = vld [vmem:[%s244 + $0x20] sm:$0xff]
                  %251 = vst [vmem:[%s245 + $0x10] sm:$0xff] %v250
                  %v252 = vld [vmem:[%s244 + $0x28] sm:$0xff]
                  %253 = vst [vmem:[%s245 + $0x18] sm:$0xff] %v252
                  %v254 = vld [vmem:[%s244 + $0x40] sm:$0xff]
                  %255 = vst [vmem:[%s245 + $0x20] sm:$0xff] %v254
                  %v256 = vld [vmem:[%s244 + $0x48] sm:$0xff]
                  %257 = vst [vmem:[%s245 + $0x28] sm:$0xff] %v256
                  %v258 = vld [vmem:[%s244 + $0x60] sm:$0xff]
                  %259 = vst [vmem:[%s245 + $0x30] sm:$0xff] %v258
                  %v260 = vld [vmem:[%s244 + $0x68] sm:$0xff]
                  %261 = vst [vmem:[%s245 + $0x38] sm:$0xff] %v260
                  %v262 = vld [vmem:[%s244 + $0x80] sm:$0xff]
                  %263 = vst [vmem:[%s245 + $0x40] sm:$0xff] %v262
                  %v264 = vld [vmem:[%s244 + $0x88] sm:$0xff]
                  %265 = vst [vmem:[%s245 + $0x48] sm:$0xff] %v264
                  %v266 = vld [vmem:[%s244 + $0xa0] sm:$0xff]
                  %267 = vst [vmem:[%s245 + $0x50] sm:$0xff] %v266
                  %v268 = vld [vmem:[%s244 + $0xa8] sm:$0xff]
                  %269 = vst [vmem:[%s245 + $0x58] sm:$0xff] %v268
                  %v270 = vld [vmem:[%s244 + $0xc0] sm:$0xff]
                  %271 = vst [vmem:[%s245 + $0x60] sm:$0xff] %v270
                  %v272 = vld [vmem:[%s244 + $0xc8] sm:$0xff]
                  %273 = vst [vmem:[%s245 + $0x68] sm:$0xff] %v272
                  %v274 = vld [vmem:[%s244 + $0xe0] sm:$0xff]
                  %275 = vst [vmem:[%s245 + $0x70] sm:$0xff] %v274
                  %v276 = vld [vmem:[%s244 + $0xe8] sm:$0xff]
                  %277 = vst [vmem:[%s245 + $0x78] sm:$0xff] %v276
                $region56: #{_lambda_.3} parent=50 // loop_footer
                  %s243 = sadd.s32 1, %s239
                $region57: #{_lambda_.3} parent=50 // loop_footer_branch
                  %238 = sbr.rel target = $region53
                $region58: #{_lambda_.3} parent=50 // loop_exit
                  _
              $region51: #{_lambda_.3} parent=35 // pred_fallthru
                _
              // Predicated region
              $region59: #{_lambda_.3} parent=35 // pred_check
                _
              $region60: #{_lambda_.3} parent=35 // pred_check_branch
                %279 = sbr.rel target = $region62
              $region61: #{_lambda_.3} parent=35 // pred_region
                _
              $region62: #{_lambda_.3} parent=35 // pred_fallthru
                _
            $region36: #{_lambda_.3} parent=31 // pred_fallthru
              _
            // Predicated region
            $region37: #{_lambda_.3} parent=31 // pred_check
              _
            $region38: #{_lambda_.3} parent=31 // pred_check_branch
              %193 = sbr.rel target = $region40
            $region39: #{_lambda_.3} parent=31 // pred_region
              %s195 = ssub.s32 256, 1
              loop: start=0, step=1, limit=1
              $region41: #{_lambda_.3} parent=39 // loop_pre_header
                _
              $region42: #{_lambda_.3} parent=39 // loop_header
                %s197 = sphi 0, %s201
                %p198 = scmp.ge.s32.totalorder %s197, 1
                %s202 = sphi %s187, %s187
                %s203 = sphi %s182, %s182
              $region43: #{_lambda_.3} parent=39 // loop_header_branch
                %200 = sbr.rel (%p198) target = $region47
              $region44: #{_lambda_.3} parent=39 // loop_body
                %v204 = vld [vmem:[%s202] sm:%s195]
                %205 = vst [vmem:[%s203] sm:%s195] %v204
                %v206 = vld [vmem:[%s202 + $0x8] sm:%s195]
                %207 = vst [vmem:[%s203 + $0x8] sm:%s195] %v206
                %v208 = vld [vmem:[%s202 + $0x20] sm:%s195]
                %209 = vst [vmem:[%s203 + $0x10] sm:%s195] %v208
                %v210 = vld [vmem:[%s202 + $0x28] sm:%s195]
                %211 = vst [vmem:[%s203 + $0x18] sm:%s195] %v210
                %v212 = vld [vmem:[%s202 + $0x40] sm:%s195]
                %213 = vst [vmem:[%s203 + $0x20] sm:%s195] %v212
                %v214 = vld [vmem:[%s202 + $0x48] sm:%s195]
                %215 = vst [vmem:[%s203 + $0x28] sm:%s195] %v214
                %v216 = vld [vmem:[%s202 + $0x60] sm:%s195]
                %217 = vst [vmem:[%s203 + $0x30] sm:%s195] %v216
                %v218 = vld [vmem:[%s202 + $0x68] sm:%s195]
                %219 = vst [vmem:[%s203 + $0x38] sm:%s195] %v218
                %v220 = vld [vmem:[%s202 + $0x80] sm:%s195]
                %221 = vst [vmem:[%s203 + $0x40] sm:%s195] %v220
                %v222 = vld [vmem:[%s202 + $0x88] sm:%s195]
                %223 = vst [vmem:[%s203 + $0x48] sm:%s195] %v222
                %v224 = vld [vmem:[%s202 + $0xa0] sm:%s195]
                %225 = vst [vmem:[%s203 + $0x50] sm:%s195] %v224
                %v226 = vld [vmem:[%s202 + $0xa8] sm:%s195]
                %227 = vst [vmem:[%s203 + $0x58] sm:%s195] %v226
                %v228 = vld [vmem:[%s202 + $0xc0] sm:%s195]
                %229 = vst [vmem:[%s203 + $0x60] sm:%s195] %v228
                %v230 = vld [vmem:[%s202 + $0xc8] sm:%s195]
                %231 = vst [vmem:[%s203 + $0x68] sm:%s195] %v230
                %v232 = vld [vmem:[%s202 + $0xe0] sm:%s195]
                %233 = vst [vmem:[%s203 + $0x70] sm:%s195] %v232
                %v234 = vld [vmem:[%s202 + $0xe8] sm:%s195]
                %235 = vst [vmem:[%s203 + $0x78] sm:%s195] %v234
              $region45: #{_lambda_.3} parent=39 // loop_footer
                %s201 = sadd.s32 1, %s197
              $region46: #{_lambda_.3} parent=39 // loop_footer_branch
                %196 = sbr.rel target = $region42
              $region47: #{_lambda_.3} parent=39 // loop_exit
                _
            $region40: #{_lambda_.3} parent=31 // pred_fallthru
              _
          $region32: #{_lambda_.3} parent=27 // pred_fallthru
            _
          %280 = vnop
        $region28: #{_lambda_.3} parent=23 // pred_fallthru
          _
        // Predicated region
        $region63: #{_lambda_.3} parent=23 // pred_check
          %p281 = pneg %p75
        $region64: #{_lambda_.3} parent=23 // pred_check_branch
          %283 = sbr.rel (%p281) target = $region66
        $region65: #{_lambda_.3} parent=23 // pred_region
          %s284 = sand.u32 %s65, 1
          %s285 = sand.u32 %s65, 1
          %s286 = smul.addr %s285, 64
          %s287 = scalar_lea.vmem [#allocation3], %s286
          %s288 = smul.u32 2, %s21
          %s289 = smul.addr %s20, 16
          %s290 = sadd.s32 %s288, %s289
          %s291 = smul.addr %s290, 8
          %s292 = scalar_lea.vmem %s1, %s291
          // Predicated region
          $region67: #{_lambda_.3} parent=65 // pred_check
            _
          $region68: #{_lambda_.3} parent=65 // pred_check_branch
            %294 = sbr.rel (0) target = $region70
          $region69: #{_lambda_.3} parent=65 // pred_region
            // Predicated region
            $region71: #{_lambda_.3} parent=69 // pred_check
              _
            $region72: #{_lambda_.3} parent=69 // pred_check_branch
              %296 = sbr.rel (0) target = $region74
            $region73: #{_lambda_.3} parent=69 // pred_region
              // Predicated region
              $region86: #{_lambda_.3} parent=73 // pred_check
                _
              $region87: #{_lambda_.3} parent=73 // pred_check_branch
                %326 = sbr.rel (0) target = $region89
              $region88: #{_lambda_.3} parent=73 // pred_region
                loop: start=0, step=1, limit=1
                $region90: #{_lambda_.3} parent=88 // loop_pre_header
                  _
                $region91: #{_lambda_.3} parent=88 // loop_header
                  %s328 = sphi 0, %s332
                  %p329 = scmp.ge.s32.totalorder %s328, 1
                  %s333 = sphi %s292, %s292
                  %s334 = sphi %s287, %s287
                $region92: #{_lambda_.3} parent=88 // loop_header_branch
                  %331 = sbr.rel (%p329) target = $region96
                $region93: #{_lambda_.3} parent=88 // loop_body
                  %v335 = vld [vmem:[%s333] sm:$0xff]
                  %336 = vst [vmem:[%s334] sm:$0xff] %v335
                  %v337 = vld [vmem:[%s333 + $0x8] sm:$0xff]
                  %338 = vst [vmem:[%s334 + $0x8] sm:$0xff] %v337
                  %v339 = vld [vmem:[%s333 + $0x20] sm:$0xff]
                  %340 = vst [vmem:[%s334 + $0x10] sm:$0xff] %v339
                  %v341 = vld [vmem:[%s333 + $0x28] sm:$0xff]
                  %342 = vst [vmem:[%s334 + $0x18] sm:$0xff] %v341
                  %v343 = vld [vmem:[%s333 + $0x40] sm:$0xff]
                  %344 = vst [vmem:[%s334 + $0x20] sm:$0xff] %v343
                  %v345 = vld [vmem:[%s333 + $0x48] sm:$0xff]
                  %346 = vst [vmem:[%s334 + $0x28] sm:$0xff] %v345
                  %v347 = vld [vmem:[%s333 + $0x60] sm:$0xff]
                  %348 = vst [vmem:[%s334 + $0x30] sm:$0xff] %v347
                  %v349 = vld [vmem:[%s333 + $0x68] sm:$0xff]
                  %350 = vst [vmem:[%s334 + $0x38] sm:$0xff] %v349
                $region94: #{_lambda_.3} parent=88 // loop_footer
                  %s332 = sadd.s32 1, %s328
                $region95: #{_lambda_.3} parent=88 // loop_footer_branch
                  %327 = sbr.rel target = $region91
                $region96: #{_lambda_.3} parent=88 // loop_exit
                  _
              $region89: #{_lambda_.3} parent=73 // pred_fallthru
                _
              // Predicated region
              $region97: #{_lambda_.3} parent=73 // pred_check
                _
              $region98: #{_lambda_.3} parent=73 // pred_check_branch
                %352 = sbr.rel target = $region100
              $region99: #{_lambda_.3} parent=73 // pred_region
                _
              $region100: #{_lambda_.3} parent=73 // pred_fallthru
                _
            $region74: #{_lambda_.3} parent=69 // pred_fallthru
              _
            // Predicated region
            $region75: #{_lambda_.3} parent=69 // pred_check
              _
            $region76: #{_lambda_.3} parent=69 // pred_check_branch
              %298 = sbr.rel target = $region78
            $region77: #{_lambda_.3} parent=69 // pred_region
              %s300 = ssub.s32 256, 1
              loop: start=0, step=1, limit=1
              $region79: #{_lambda_.3} parent=77 // loop_pre_header
                _
              $region80: #{_lambda_.3} parent=77 // loop_header
                %s302 = sphi 0, %s306
                %p303 = scmp.ge.s32.totalorder %s302, 1
                %s307 = sphi %s292, %s292
                %s308 = sphi %s287, %s287
              $region81: #{_lambda_.3} parent=77 // loop_header_branch
                %305 = sbr.rel (%p303) target = $region85
              $region82: #{_lambda_.3} parent=77 // loop_body
                %v309 = vld [vmem:[%s307] sm:%s300]
                %310 = vst [vmem:[%s308] sm:%s300] %v309
                %v311 = vld [vmem:[%s307 + $0x8] sm:%s300]
                %312 = vst [vmem:[%s308 + $0x8] sm:%s300] %v311
                %v313 = vld [vmem:[%s307 + $0x20] sm:%s300]
                %314 = vst [vmem:[%s308 + $0x10] sm:%s300] %v313
                %v315 = vld [vmem:[%s307 + $0x28] sm:%s300]
                %316 = vst [vmem:[%s308 + $0x18] sm:%s300] %v315
                %v317 = vld [vmem:[%s307 + $0x40] sm:%s300]
                %318 = vst [vmem:[%s308 + $0x20] sm:%s300] %v317
                %v319 = vld [vmem:[%s307 + $0x48] sm:%s300]
                %320 = vst [vmem:[%s308 + $0x28] sm:%s300] %v319
                %v321 = vld [vmem:[%s307 + $0x60] sm:%s300]
                %322 = vst [vmem:[%s308 + $0x30] sm:%s300] %v321
                %v323 = vld [vmem:[%s307 + $0x68] sm:%s300]
                %324 = vst [vmem:[%s308 + $0x38] sm:%s300] %v323
              $region83: #{_lambda_.3} parent=77 // loop_footer
                %s306 = sadd.s32 1, %s302
              $region84: #{_lambda_.3} parent=77 // loop_footer_branch
                %301 = sbr.rel target = $region80
              $region85: #{_lambda_.3} parent=77 // loop_exit
                _
            $region78: #{_lambda_.3} parent=69 // pred_fallthru
              _
          $region70: #{_lambda_.3} parent=65 // pred_fallthru
            _
          %353 = vnop
        $region66: #{_lambda_.3} parent=23 // pred_fallthru
          _
      $region24: #{_lambda_.3} parent=5 // pred_fallthru
        _
      %p354 = scmp.le.s32.totalorder 1, %s13
      %p355 = scmp.lt.s32.totalorder %s13, 5
      %p356 = pnand %p354, %p355
      %p357 = pneg %p356
      // Predicated region
      $region101: #{_lambda_.3} parent=5 // pred_check
        _
      $region102: #{_lambda_.3} parent=5 // pred_check_branch
        %359 = sbr.rel (%p356) target = $region104
      $region103: #{_lambda_.3} parent=5 // pred_region
        %s360 = ssub.s32 %s13, 1
        %s361 = sand.u32 %s40, 1
        %s362 = sand.u32 %s40, 1
        %s363 = smul.addr %s362, 128
        %s364 = scalar_lea.vmem [#allocation2], %s363
        // Predicated region
        $region105: #{_lambda_.3} parent=103 // pred_check
          %p365 = pneg %p53
        $region106: #{_lambda_.3} parent=103 // pred_check_branch
          %367 = sbr.rel (%p365) target = $region108
        $region107: #{_lambda_.3} parent=103 // pred_region
          _
        $region108: #{_lambda_.3} parent=103 // pred_fallthru
          _
        %s368 = sand.u32 %s68, 1
        %s369 = sand.u32 %s68, 1
        %s370 = smul.addr %s369, 64
        %s371 = scalar_lea.vmem [#allocation3], %s370
        // Predicated region
        $region109: #{_lambda_.3} parent=103 // pred_check
          %p372 = pneg %p81
        $region110: #{_lambda_.3} parent=103 // pred_check_branch
          %374 = sbr.rel (%p372) target = $region112
        $region111: #{_lambda_.3} parent=103 // pred_region
          _
        $region112: #{_lambda_.3} parent=103 // pred_fallthru
          _
        %s375 = sand.u32 %s40, 1
        %s376 = sand.u32 %s40, 1
        %s377 = smul.addr %s376, 128
        %s378 = scalar_lea.vmem [#allocation2], %s377
        %p379 = pneg %p53
        %p380 = pneg %p50
        %s381 = sand.u32 %s68, 1
        %s382 = sand.u32 %s68, 1
        %s383 = smul.addr %s382, 64
        %s384 = scalar_lea.vmem [#allocation3], %s383
        %p385 = pneg %p81
        %p386 = pneg %p78
        %p387 = pneg %p102
        %p388 = pneg %p99
        %p389 = pneg %p123
        %p390 = pneg %p120
        %p391 = pneg %p151
        %p392 = pneg %p148
        %s393 = sand.u32 %s138, 1
        %s394 = scalar_lea.sflag [#allocation5], %s393
        %s395 = sand.u32 %s138, 1
        %s396 = smul.addr %s395, 192
        %s397 = scalar_lea.vmem [#allocation4], %s396
        %s398 = smul.u32 2, %s23
        %s399 = smul.u32 2, %s23
        %s400 = smul.u32 2, %s23
        %v401 = vld [vmem:[%s364] sm:$0xff]
        %v402 = vld [vmem:[%s364 + $0x8] sm:$0xff]
        %v403 = vld [vmem:[%s364 + $0x10] sm:$0xff]
        %v404 = vld [vmem:[%s364 + $0x18] sm:$0xff]
        %v405 = vld [vmem:[%s364 + $0x20] sm:$0xff]
        %v406 = vld [vmem:[%s364 + $0x28] sm:$0xff]
        %v407 = vld [vmem:[%s364 + $0x30] sm:$0xff]
        %v408 = vld [vmem:[%s364 + $0x38] sm:$0xff]
        %v409 = vld [vmem:[%s364 + $0x40] sm:$0xff]
        %v410 = vld [vmem:[%s364 + $0x48] sm:$0xff]
        %v411 = vld [vmem:[%s364 + $0x50] sm:$0xff]
        %v412 = vld [vmem:[%s364 + $0x58] sm:$0xff]
        %v413 = vld [vmem:[%s364 + $0x60] sm:$0xff]
        %v414 = vld [vmem:[%s364 + $0x68] sm:$0xff]
        %v415 = vld [vmem:[%s364 + $0x70] sm:$0xff]
        %v416 = vld [vmem:[%s364 + $0x78] sm:$0xff]
        %v417 = vld [vmem:[%s2] sm:$0x1]
        %v418 = vld [vmem:[%s2 + $0x1] sm:$0x1]
        %v419 = vld [vmem:[%s2 + $0x2] sm:$0x1]
        %v420 = vld [vmem:[%s2 + $0x3] sm:$0x1]
        %v421 = vld [vmem:[%s2 + $0x4] sm:$0x1]
        %v422 = vld [vmem:[%s2 + $0x5] sm:$0x1]
        %v423 = vld [vmem:[%s2 + $0x6] sm:$0x1]
        %v424 = vld [vmem:[%s2 + $0x7] sm:$0x1]
        %v433 = vlaneseq
        %v434 = vshrl.u32 %v433, 7
        %v435 = vsub.s32 0, %v434
        %v436 = vrot.slane %v417, %v435
        %v437 = vlaneseq
        %v438 = vshrl.u32 %v437, 7
        %v439 = vsub.s32 0, %v438
        %v440 = vrot.slane %v418, %v439
        %v441 = vlaneseq
        %v442 = vshrl.u32 %v441, 7
        %v443 = vsub.s32 0, %v442
        %v444 = vrot.slane %v419, %v443
        %v445 = vlaneseq
        %v446 = vshrl.u32 %v445, 7
        %v447 = vsub.s32 0, %v446
        %v448 = vrot.slane %v420, %v447
        %v449 = vlaneseq
        %v450 = vshrl.u32 %v449, 7
        %v451 = vsub.s32 0, %v450
        %v452 = vrot.slane %v421, %v451
        %v453 = vlaneseq
        %v454 = vshrl.u32 %v453, 7
        %v455 = vsub.s32 0, %v454
        %v456 = vrot.slane %v422, %v455
        %v457 = vlaneseq
        %v458 = vshrl.u32 %v457, 7
        %v459 = vsub.s32 0, %v458
        %v460 = vrot.slane %v423, %v459
        %v461 = vlaneseq
        %v462 = vshrl.u32 %v461, 7
        %v463 = vsub.s32 0, %v462
        %v464 = vrot.slane %v424, %v463
        %v473 = vmul.f32 %v401, %v436
        %v474 = vmul.f32 %v402, %v436
        %v475 = vmul.f32 %v403, %v440
        %v476 = vmul.f32 %v404, %v440
        %v477 = vmul.f32 %v405, %v444
        %v478 = vmul.f32 %v406, %v444
        %v479 = vmul.f32 %v407, %v448
        %v480 = vmul.f32 %v408, %v448
        %v481 = vmul.f32 %v409, %v452
        %v482 = vmul.f32 %v410, %v452
        %v483 = vmul.f32 %v411, %v456
        %v484 = vmul.f32 %v412, %v456
        %v485 = vmul.f32 %v413, %v460
        %v486 = vmul.f32 %v414, %v460
        %v487 = vmul.f32 %v415, %v464
        %v488 = vmul.f32 %v416, %v464
        %v489 = vld [vmem:[%s3] sm:$0x1]
        %v490 = vld [vmem:[%s3 + $0x1] sm:$0x1]
        %v491 = vld [vmem:[%s3 + $0x2] sm:$0x1]
        %v492 = vld [vmem:[%s3 + $0x3] sm:$0x1]
        %v493 = vld [vmem:[%s3 + $0x4] sm:$0x1]
        %v494 = vld [vmem:[%s3 + $0x5] sm:$0x1]
        %v495 = vld [vmem:[%s3 + $0x6] sm:$0x1]
        %v496 = vld [vmem:[%s3 + $0x7] sm:$0x1]
        %v505 = vlaneseq
        %v506 = vshrl.u32 %v505, 7
        %v507 = vsub.s32 0, %v506
        %v508 = vrot.slane %v489, %v507
        %v509 = vlaneseq
        %v510 = vshrl.u32 %v509, 7
        %v511 = vsub.s32 0, %v510
        %v512 = vrot.slane %v490, %v511
        %v513 = vlaneseq
        %v514 = vshrl.u32 %v513, 7
        %v515 = vsub.s32 0, %v514
        %v516 = vrot.slane %v491, %v515
        %v517 = vlaneseq
        %v518 = vshrl.u32 %v517, 7
        %v519 = vsub.s32 0, %v518
        %v520 = vrot.slane %v492, %v519
        %v521 = vlaneseq
        %v522 = vshrl.u32 %v521, 7
        %v523 = vsub.s32 0, %v522
        %v524 = vrot.slane %v493, %v523
        %v525 = vlaneseq
        %v526 = vshrl.u32 %v525, 7
        %v527 = vsub.s32 0, %v526
        %v528 = vrot.slane %v494, %v527
        %v529 = vlaneseq
        %v530 = vshrl.u32 %v529, 7
        %v531 = vsub.s32 0, %v530
        %v532 = vrot.slane %v495, %v531
        %v533 = vlaneseq
        %v534 = vshrl.u32 %v533, 7
        %v535 = vsub.s32 0, %v534
        %v536 = vrot.slane %v496, %v535
        %v545 = vadd.f32 %v473, %v508
        %v546 = vadd.f32 %v474, %v508
        %v547 = vadd.f32 %v475, %v512
        %v548 = vadd.f32 %v476, %v512
        %v549 = vadd.f32 %v477, %v516
        %v550 = vadd.f32 %v478, %v516
        %v551 = vadd.f32 %v479, %v520
        %v552 = vadd.f32 %v480, %v520
        %v553 = vadd.f32 %v481, %v524
        %v554 = vadd.f32 %v482, %v524
        %v555 = vadd.f32 %v483, %v528
        %v556 = vadd.f32 %v484, %v528
        %v557 = vadd.f32 %v485, %v532
        %v558 = vadd.f32 %v486, %v532
        %v559 = vadd.f32 %v487, %v536
        %v560 = vadd.f32 %v488, %v536
        %vm561 = vcmp.ge.f32.partialorder %v545, 0.0
        %vm562 = vcmp.ge.f32.partialorder %v546, 0.0
        %vm563 = vcmp.ge.f32.partialorder %v547, 0.0
        %vm564 = vcmp.ge.f32.partialorder %v548, 0.0
        %vm565 = vcmp.ge.f32.partialorder %v549, 0.0
        %vm566 = vcmp.ge.f32.partialorder %v550, 0.0
        %vm567 = vcmp.ge.f32.partialorder %v551, 0.0
        %vm568 = vcmp.ge.f32.partialorder %v552, 0.0
        %vm569 = vcmp.ge.f32.partialorder %v553, 0.0
        %vm570 = vcmp.ge.f32.partialorder %v554, 0.0
        %vm571 = vcmp.ge.f32.partialorder %v555, 0.0
        %vm572 = vcmp.ge.f32.partialorder %v556, 0.0
        %vm573 = vcmp.ge.f32.partialorder %v557, 0.0
        %vm574 = vcmp.ge.f32.partialorder %v558, 0.0
        %vm575 = vcmp.ge.f32.partialorder %v559, 0.0
        %vm576 = vcmp.ge.f32.partialorder %v560, 0.0
        %v577 = vmul.f32 %v545, 0.1
        %v578 = vmul.f32 %v546, 0.1
        %v579 = vmul.f32 %v547, 0.1
        %v580 = vmul.f32 %v548, 0.1
        %v581 = vmul.f32 %v549, 0.1
        %v582 = vmul.f32 %v550, 0.1
        %v583 = vmul.f32 %v551, 0.1
        %v584 = vmul.f32 %v552, 0.1
        %v585 = vmul.f32 %v553, 0.1
        %v586 = vmul.f32 %v554, 0.1
        %v587 = vmul.f32 %v555, 0.1
        %v588 = vmul.f32 %v556, 0.1
        %v589 = vmul.f32 %v557, 0.1
        %v590 = vmul.f32 %v558, 0.1
        %v591 = vmul.f32 %v559, 0.1
        %v592 = vmul.f32 %v560, 0.1
        %v593 = vsel %vm561, %v545, %v577
        %v594 = vsel %vm562, %v546, %v578
        %v595 = vsel %vm563, %v547, %v579
        %v596 = vsel %vm564, %v548, %v580
        %v597 = vsel %vm565, %v549, %v581
        %v598 = vsel %vm566, %v550, %v582
        %v599 = vsel %vm567, %v551, %v583
        %v600 = vsel %vm568, %v552, %v584
        %v601 = vsel %vm569, %v553, %v585
        %v602 = vsel %vm570, %v554, %v586
        %v603 = vsel %vm571, %v555, %v587
        %v604 = vsel %vm572, %v556, %v588
        %v605 = vsel %vm573, %v557, %v589
        %v606 = vsel %vm574, %v558, %v590
        %v607 = vsel %vm575, %v559, %v591
        %v608 = vsel %vm576, %v560, %v592
        %vm609 = vcmask 261120
        %610 = vst.msk [vmem:[%s397] sm:$0xff] %vm609, %v593
        %611 = vst.msk [vmem:[%s397 + $0x8] sm:$0xff] %vm609, %v594
        %612 = vst.msk [vmem:[%s397 + $0x10] sm:$0xff] %vm609, %v595
        %613 = vst.msk [vmem:[%s397 + $0x18] sm:$0xff] %vm609, %v596
        %614 = vst.msk [vmem:[%s397 + $0x20] sm:$0xff] %vm609, %v597
        %615 = vst.msk [vmem:[%s397 + $0x28] sm:$0xff] %vm609, %v598
        %616 = vst.msk [vmem:[%s397 + $0x30] sm:$0xff] %vm609, %v599
        %617 = vst.msk [vmem:[%s397 + $0x38] sm:$0xff] %vm609, %v600
        %618 = vst.msk [vmem:[%s397 + $0x40] sm:$0xff] %vm609, %v601
        %619 = vst.msk [vmem:[%s397 + $0x48] sm:$0xff] %vm609, %v602
        %620 = vst.msk [vmem:[%s397 + $0x50] sm:$0xff] %vm609, %v603
        %621 = vst.msk [vmem:[%s397 + $0x58] sm:$0xff] %vm609, %v604
        %622 = vst.msk [vmem:[%s397 + $0x60] sm:$0xff] %vm609, %v605
        %623 = vst.msk [vmem:[%s397 + $0x68] sm:$0xff] %vm609, %v606
        %624 = vst.msk [vmem:[%s397 + $0x70] sm:$0xff] %vm609, %v607
        %625 = vst.msk [vmem:[%s397 + $0x78] sm:$0xff] %vm609, %v608
        %v626 = vld [vmem:[%s371] sm:$0xff]
        %v627 = vld [vmem:[%s371 + $0x8] sm:$0xff]
        %v628 = vld [vmem:[%s371 + $0x10] sm:$0xff]
        %v629 = vld [vmem:[%s371 + $0x18] sm:$0xff]
        %v630 = vld [vmem:[%s371 + $0x20] sm:$0xff]
        %v631 = vld [vmem:[%s371 + $0x28] sm:$0xff]
        %v632 = vld [vmem:[%s371 + $0x30] sm:$0xff]
        %v633 = vld [vmem:[%s371 + $0x38] sm:$0xff]
        %s634 = scalar_lea.vmem %s397, 128 [#allocation4]
        %635 = vst.msk [vmem:[%s634] sm:$0xff] %vm609, %v626
        %636 = vst.msk [vmem:[%s634 + $0x8] sm:$0xff] %vm609, %v627
        %637 = vst.msk [vmem:[%s634 + $0x10] sm:$0xff] %vm609, %v628
        %638 = vst.msk [vmem:[%s634 + $0x18] sm:$0xff] %vm609, %v629
        %639 = vst.msk [vmem:[%s634 + $0x20] sm:$0xff] %vm609, %v630
        %640 = vst.msk [vmem:[%s634 + $0x28] sm:$0xff] %vm609, %v631
        %641 = vst.msk [vmem:[%s634 + $0x30] sm:$0xff] %vm609, %v632
        %642 = vst.msk [vmem:[%s634 + $0x38] sm:$0xff] %vm609, %v633
        %s643 = sand.u32 %s138, 1
        %s644 = scalar_lea.sflag [#allocation5], %s643
        %s645 = sand.u32 %s138, 1
        %s646 = smul.addr %s645, 192
        %s647 = scalar_lea.vmem [#allocation4], %s646
        // Predicated region
        $region113: #{_lambda_.3} parent=103 // pred_check
          %p648 = pneg %p148
        $region114: #{_lambda_.3} parent=103 // pred_check_branch
          %650 = sbr.rel (%p648) target = $region116
        $region115: #{_lambda_.3} parent=103 // pred_region
          #allocation7 [shape = 'u32[6]{0}', space=smem, size = 0x18, scoped, tag = 'DMA stride descriptor']
          %s651 = smul.u32 2, %s23
          %s653 = ssub.s32 3072, 3072
          %654 = vsyncadd %s644, %s653
          %s655 = smul.addr %s22, 48
          %s656 = sadd.s32 %s651, %s655
          %s657 = smul.addr %s656, 128
          %s658 = scalar_lea.hbm %s4, %s657
          %s660 = sshll.u32 1, 14
          %s661 = sxor.u32 4294967295, %s660
          %s664 = sshll.u32 7, 18
          %s665 = sxor.u32 4294967295, %s664
          %s666 = sand.u32 0, %s665
          %s668 = sor.u32 %s666, 0
          %s669 = sshll.u32 %s647, 4
          %s670 = int_to_ptr.vmem [resolvable:$true] %s669
          %676 = sst [smem:[#allocation7]] 256
          %s677 = scalar_lea.smem [#allocation7], 1
          %678 = sst [smem:[%s677]] 512
          %s679 = scalar_lea.smem [#allocation7], 2
          %680 = sst [smem:[%s679]] 2
          %s681 = scalar_lea.smem [#allocation7], 3
          %682 = sst [smem:[%s681]] 128
          %s683 = scalar_lea.smem [#allocation7], 4
          %684 = sst [smem:[%s683]] 128
          %s685 = scalar_lea.smem [#allocation7], 5
          %686 = sst [smem:[%s685]] 8
          %688 = dma.general %s670, 3072, %s658, %s644, 131072, [#allocation7], %s668, 0
        $region116: #{_lambda_.3} parent=103 // pred_fallthru
          _
      $region104: #{_lambda_.3} parent=5 // pred_fallthru
        _
      %p689 = scmp.le.s32.totalorder 2, %s13
      // Predicated region
      $region117: #{_lambda_.3} parent=5 // pred_check
        %p690 = pneg %p689
      $region118: #{_lambda_.3} parent=5 // pred_check_branch
        %692 = sbr.rel (%p690) target = $region120
      $region119: #{_lambda_.3} parent=5 // pred_region
        %s693 = ssub.s32 %s13, 2
        // Predicated region
        $region121: #{_lambda_.3} parent=119 // pred_check
          %p694 = pneg %p154
        $region122: #{_lambda_.3} parent=119 // pred_check_branch
          %696 = sbr.rel (%p694) target = $region124
        $region123: #{_lambda_.3} parent=119 // pred_region
          %s697 = sand.u32 %s139, 1
          %s698 = scalar_lea.sflag [#allocation5], %s697
          %s699 = sand.u32 %s139, 1
          %s700 = smul.addr %s699, 192
          %s701 = scalar_lea.vmem [#allocation4], %s700
          %702 = dma.done %s698, 3072
        $region124: #{_lambda_.3} parent=119 // pred_fallthru
          _
      $region120: #{_lambda_.3} parent=5 // pred_fallthru
        _
    $region6: #{_lambda_.3} parent=1 // loop_footer
      %s17 = sadd.s32 1, %s13
    $region7: #{_lambda_.3} parent=1 // loop_footer_branch
      %12 = sbr.rel target = $region3
    $region8: #{_lambda_.3} parent=1 // loop_exit
      _
    %703 = vsyncpa [#allocation5], 1
    %s704 = scalar_lea.sflag [#allocation5], 1
    %705 = vsyncpa %s704, 1

</llo_original>
